<compile_context>
chip_gen: v7x
topology: tpu7x:2x2x1
jax: 0.10.0
libtpu: 0.0.40
codegen_flags: <defaults>
</compile_context>

<pallas_src>
import numpy as np
import jax
import jax.numpy as jnp
from jax.experimental import pallas as pl
from jax.experimental.pallas import tpu as pltpu


# --------------------------------------------------------------------------
# Fused Pallas kernel (B batch images per grid step, stacked along M)
# --------------------------------------------------------------------------
def _make_fractal_kernel(columns, selected_col, H, BH, WC):
    """Builds the fused kernel body.

    Refs:
      x_ref:     (1, BH, WC)      bf16  lane-dense input slab (BH = B*H rows)
      w_ref:     (L, 3*WC, WC)    bf16  banded conv weights, dy taps stacked on K
      scale_ref: (L, WC)          f32   folded BN scale, tiled over W
      shift_ref: (L, WC)          f32   folded BN shift (incl. conv bias)
      o_ref:     (1, BH, WC)      f32   fused block output
    """

    def kernel(x_ref, w_ref, scale_ref, shift_ref, o_ref):
        # Per-image top/bottom boundary masks.  They implement the conv's
        # vertical zero padding AND keep stacked images from bleeding into each
        # other across the rolled sublane axis.  Computed once per grid step.
        row = jax.lax.broadcasted_iota(jnp.int32, (BH, WC), 0) % H
        not_first = row != 0        # rows whose y-1 neighbour is valid
        not_last = row != H - 1     # rows whose y+1 neighbour is valid

        def conv_bn_relu(idx, act):
            # act: (BH, WC) f32.  One 3x3 conv = ONE bf16 MXU matmul of
            # (BH, 3*WC) @ (3*WC, WC) with f32 accumulation:
            #   * dy taps: sublane rolls (XLU) + boundary masks, concatenated
            #     along lanes -> [up | act | down].
            #   * dx taps + width zero padding: folded into the banded weights.
            # Followed by a single fused BN + ReLU epilogue on the f32 acc.
            up = jnp.where(not_first, pltpu.roll(act, 1, axis=0), 0.0)
            down = jnp.where(not_last, pltpu.roll(act, BH - 1, axis=0), 0.0)
            lhs = jnp.concatenate([up, act, down], axis=1).astype(jnp.bfloat16)
            acc = jnp.dot(lhs, w_ref[idx], preferred_element_type=jnp.float32)
            sc = scale_ref[pl.ds(idx, 1), :]    # (1, WC)
            sh = shift_ref[pl.ds(idx, 1), :]    # (1, WC)
            return jnp.maximum(acc * sc + sh, 0.0)

        x = x_ref[0].astype(jnp.float32)        # (BH, WC)

        if selected_col == -1:
            counter = [0] * columns             # generalizes torch's [0]*4

            def conv_at(col, act):
                idx = 2 ** (col - 1) - 1 + counter[col - 1]
                counter[col - 1] += 1
                return conv_bn_relu(idx, act)

            def traverse(col, act):
                # Returns (running sum over paths, n_paths); avoids keeping the
                # whole path list live (fewer simultaneous (BH, WC) f32 slabs).
                if col == columns:
                    return conv_at(col, act), 1
                y0 = conv_at(col, act)
                s1, n1 = traverse(col + 1, act)
                s2, n2 = traverse(col + 1, s1 * (1.0 / n1))
                # TODO(synk): training-mode stochastic drop-path not implemented.
                return y0 + s2, 1 + n2

            s, n = traverse(1, x)
            out = s * (1.0 / n)
        else:
            base = 2 ** (selected_col - 1) - 1
            act = x
            for i in range(2 ** (selected_col - 1)):
                act = conv_bn_relu(base + i, act)
            out = act

        o_ref[0] = out

    return kernel


# --------------------------------------------------------------------------
# Host-side parameter folding: 3x3 conv -> banded lane-dense matrices,
# dy taps stacked along K so each conv is one (BH, 3*WC) @ (3*WC, WC) dot.
# --------------------------------------------------------------------------
def _prepare_banded_params(params, in_chan, out_chan, W):
    Cmax = max(in_chan, out_chan)
    WC = W * Cmax
    L = len(params)
    # S[dx][w_in, w_out] = 1 iff w_in == w_out + dx - 1 (both inside [0, W)).
    shifts = [np.eye(W, k=1, dtype=np.float32),
              np.eye(W, dtype=np.float32),
              np.eye(W, k=-1, dtype=np.float32)]
    # NOTE: the banded matrix is only ~3/W dense; fine at these shapes, but for
    # much larger W the W dimension should be tiled (keeps the MXU fed with
    # mostly-nonzero K and bounds the quadratic VMEM weight footprint).
    wcat = np.zeros((L, 3 * WC, WC), np.float32)
    scl = np.zeros((L, WC), np.float32)
    sht = np.zeros((L, WC), np.float32)
    for l, p in enumerate(params):
        w = np.asarray(p["w"], np.float32)              # (3, 3, cin, out_chan) HWIO
        cin = w.shape[2]
        wp = np.zeros((3, 3, Cmax, Cmax), np.float32)   # zero-pad in/out channels
        wp[:, :, :cin, :out_chan] = w
        for dy in range(3):
            m = np.zeros((WC, WC), np.float32)
            for dx in range(3):
                m += np.kron(shifts[dx], wp[dy, dx])
            wcat[l, dy * WC:(dy + 1) * WC, :] = m
        sc = np.zeros((Cmax,), np.float32)
        sh = np.zeros((Cmax,), np.float32)
        sc[:out_chan] = np.asarray(p["scale"], np.float32)
        sh[:out_chan] = np.asarray(p["shift"], np.float32)
        scl[l] = np.tile(sc, W)
        sht[l] = np.tile(sh, W)
    return (jnp.asarray(wcat, jnp.bfloat16),   # bf16 MXU RHS, dy stacked on K
            jnp.asarray(scl, jnp.float32),
            jnp.asarray(sht, jnp.float32),
            Cmax)


# --------------------------------------------------------------------------
# pallas_call wrapper
# --------------------------------------------------------------------------
def _build_forward_fn(columns, selected_col, N, c_in, c_out, Cmax, H, W, L, B):
    WC = W * Cmax
    BH = B * H
    G = (N + B - 1) // B
    Npad = G * B
    kernel = _make_fractal_kernel(columns, selected_col, H, BH, WC)

    def fwd(x_nchw, wcat, scl, sht):
        # NCHW -> lane-dense (G, B*H, W*Cmax) bf16 slabs (layout plumbing only;
        # bf16 halves the input DMA and is numerically identical since the MXU
        # operands are bf16 anyway).
        x = jnp.transpose(x_nchw, (0, 2, 3, 1)).astype(jnp.bfloat16)
        if Cmax > c_in:
            x = jnp.pad(x, ((0, 0), (0, 0), (0, 0), (0, Cmax - c_in)))
        if Npad > N:
            x = jnp.pad(x, ((0, Npad - N), (0, 0), (0, 0), (0, 0)))
        x = x.reshape(G, BH, WC)

        out = pl.pallas_call(
            kernel,
            out_shape=jax.ShapeDtypeStruct((G, BH, WC), jnp.float32),
            grid_spec=pltpu.PrefetchScalarGridSpec(
                num_scalar_prefetch=0,
                grid=(G,),
                in_specs=[
                    pl.BlockSpec((1, BH, WC), lambda g: (g, 0, 0)),
                    # Grid-invariant operands (weights / BN params); small at
                    # these shapes so default buffering is fine.
                    pl.BlockSpec((L, 3 * WC, WC), lambda g: (0, 0, 0)),
                    pl.BlockSpec((L, WC), lambda g: (0, 0)),
                    pl.BlockSpec((L, WC), lambda g: (0, 0)),
                ],
                out_specs=pl.BlockSpec((1, BH, WC), lambda g: (g, 0, 0)),
            ),
            compiler_params=pltpu.CompilerParams(
                dimension_semantics=("parallel",)),
        )(x, wcat, scl, sht)

        out = out.reshape(Npad, H, W, Cmax)[:N, :, :, :c_out]
        return jnp.transpose(out, (0, 3, 1, 2))          # back to NCHW, f32

    return fwd


# --------------------------------------------------------------------------
# Parameter init (deterministic, mirrors the PyTorch __init__)
# --------------------------------------------------------------------------
def init_fractal_params(key, in_chan, out_chan, columns, eps=1e-5):
    num_convs = 2 ** columns - 1
    firsts = set()
    first = 0
    for i in range(num_convs):
        if i == first:
            firsts.add(i)
            first = (first + 1) * 2 - 1

    keys = jax.random.split(key, num_convs * 2)
    params = []
    for i in range(num_convs):
        cin = in_chan if i in firsts else out_chan
        fan_in = cin * 3 * 3
        std = float(np.sqrt(2.0 / fan_in))        # kaiming_normal_, fan_in, relu
        w = std * jax.random.normal(keys[2 * i], (3, 3, cin, out_chan), jnp.float32)
        bound = float(1.0 / np.sqrt(fan_in))      # PyTorch default conv bias init
        b = jax.random.uniform(keys[2 * i + 1], (out_chan,), jnp.float32,
                               minval=-bound, maxval=bound)
        # Fresh BatchNorm2d running stats (eval mode): mean=0, var=1, g=1, b=0.
        gamma = jnp.ones((out_chan,), jnp.float32)
        beta = jnp.zeros((out_chan,), jnp.float32)
        running_mean = jnp.zeros((out_chan,), jnp.float32)
        running_var = jnp.ones((out_chan,), jnp.float32)
        scale = gamma / jnp.sqrt(running_var + eps)
        shift = (b - running_mean) * scale + beta
        params.append({"w": w, "scale": scale, "shift": shift})
    return params


# --------------------------------------------------------------------------
# FractalBlock (Pallas)
# --------------------------------------------------------------------------
class FractalBlockPallas:
    def __init__(self, in_chan, out_chan, columns, loc_drop, drop_path, key):
        self.in_chan = in_chan
        self.out_chan = out_chan
        self.columns = columns
        self.loc_drop = loc_drop
        self.drop_path = drop_path
        self.params = init_fractal_params(key, in_chan, out_chan, columns)
        self._banded_cache = {}   # W -> (wcat, scl, sht, Cmax)
        self._fwd_cache = {}      # (N, H, W, B, selected_col) -> jitted forward

    def _banded(self, W):
        if W not in self._banded_cache:
            self._banded_cache[W] = _prepare_banded_params(
                self.params, self.in_chan, self.out_chan, W)
        return self._banded_cache[W]

    def forward(self, x_nchw, selected_col):
        N, cin, H, W = x_nchw.shape
        assert cin == self.in_chan
        wcat, scl, sht, Cmax = self._banded(W)
        # Batch-tile: stack images so each MXU dot has ~256 rows (M dim),
        # capped by the available batch.
        B = max(1, min(N, 256 // max(H, 1)))
        key = (N, H, W, B, int(selected_col))
        if key not in self._fwd_cache:
            self._fwd_cache[key] = jax.jit(_build_forward_fn(
                self.columns, int(selected_col), N, self.in_chan, self.out_chan,
                Cmax, H, W, len(self.params), B))
        return self._fwd_cache[key](x_nchw, wcat, scl, sht)


# --------------------------------------------------------------------------
# Pure-JAX reference (correctness check only; full f32)
# --------------------------------------------------------------------------
def _ref_conv(x_nhwc, w, scale, shift):
    y = jax.lax.conv_general_dilated(
        x_nhwc, w, window_strides=(1, 1), padding="SAME",
        dimension_numbers=("NHWC", "HWIO", "NHWC"))
    y = y * scale[None, None, None, :] + shift[None, None, None, :]
    return jnp.maximum(y, 0.0)


def ref_forward(block, inputs_nchw, selected_col):
    x = jnp.transpose(inputs_nchw, (0, 2, 3, 1)).astype(jnp.float32)

    def conv(idx, z):
        p = block.params[idx]
        return _ref_conv(z, p["w"], p["scale"], p["shift"])

    if selected_col == -1:
        idxs = [0] * block.columns

        def trav(col, inp):
            if col == block.columns:
                y = conv(2 ** (col - 1) - 1 + idxs[col - 1], inp)
                idxs[col - 1] += 1
                return [y]
            a = conv(2 ** (col - 1) - 1 + idxs[col - 1], inp)
            idxs[col - 1] += 1
            yp = trav(col + 1, inp)
            ym = jnp.mean(jnp.stack(yp, 0), axis=0)
            yp = trav(col + 1, ym)
            return [a] + yp

        out = jnp.mean(jnp.stack(trav(1, x), 0), axis=0)
    else:
        out = x
        base = 2 ** (selected_col - 1) - 1
        for i in range(2 ** (selected_col - 1)):
            out = conv(base + i, out)
    return jnp.transpose(out, (0, 3, 1, 2))


# --------------------------------------------------------------------------
if __name__ == "__main__":
    key = jax.random.PRNGKey(0)
    k_param, k_x = jax.random.split(key)

    N, Cin, H, W = 2, 4, 16, 16
    Cout, columns = 8, 3

    block = FractalBlockPallas(Cin, Cout, columns,
                               loc_drop=0.15, drop_path=True, key=k_param)
    x = jax.random.normal(k_x, (N, Cin, H, W), jnp.float32)

    out_joint = jax.block_until_ready(block.forward(x, -1))        # fractal join
    out_global = jax.block_until_ready(block.forward(x, columns))  # single column

    assert out_joint.shape == (N, Cout, H, W), out_joint.shape
    assert out_global.shape == (N, Cout, H, W), out_global.shape

    # Reference is full f32; kernel uses bf16 MXU operands with f32 accumulation,
    # so allow a slightly looser tolerance.
    ref_joint = ref_forward(block, x, -1)
    ref_global = ref_forward(block, x, columns)
    np.testing.assert_allclose(np.asarray(out_joint), np.asarray(ref_joint),
                               rtol=5e-2, atol=5e-2)
    np.testing.assert_allclose(np.asarray(out_global), np.asarray(ref_global),
                               rtol=5e-2, atol=5e-2)

    print("KERNEL_OK")
</pallas_src>

<mosaic_0001>
module attributes {stable_mosaic.version = 11 : i64} {
  func.func @kernel(%arg0: i32, %arg1: memref<1x32x128xbf16, #tpu.memory_space<vmem>>, %arg2: memref<7x384x128xbf16, #tpu.memory_space<vmem>>, %arg3: memref<7x128xf32, #tpu.memory_space<vmem>>, %arg4: memref<7x128xf32, #tpu.memory_space<vmem>>, %arg5: memref<1x32x128xf32, #tpu.memory_space<vmem>>) attributes {dimension_semantics = [#tpu.dimension_semantics<parallel>], iteration_bounds = array<i64: 1>, scalar_prefetch = 0 : i64, scratch_operands = 0 : i64, tpu.core_type = #tpu.core_type<tc>, window_params = [{transform_indices = @transform_0, window_bounds = array<i64: 1, 32, 128>}, {pipeline_mode = #tpu.pipeline_mode<synchronous>, transform_indices = @transform_1, window_bounds = array<i64: 7, 384, 128>}, {pipeline_mode = #tpu.pipeline_mode<synchronous>, transform_indices = @transform_2, window_bounds = array<i64: 7, 128>}, {pipeline_mode = #tpu.pipeline_mode<synchronous>, transform_indices = @transform_3, window_bounds = array<i64: 7, 128>}, {transform_indices = @transform_4, window_bounds = array<i64: 1, 32, 128>}]} {
    %0 = tpu.iota {dimensions = array<i32: 0>} : vector<32x128xi32>
    %c16_i32 = arith.constant 16 : i32
    %c0_i32 = arith.constant 0 : i32
    %1 = arith.cmpi eq, %c16_i32, %c0_i32 : i32
    %c1_i32 = arith.constant 1 : i32
    %2 = arith.select %1, %c1_i32, %c16_i32 : i32
    %3 = vector.broadcast %2 : i32 to vector<32x128xi32>
    %4 = arith.remsi %0, %3 : vector<32x128xi32>
    %c0_i32_0 = arith.constant 0 : i32
    %5 = vector.broadcast %c0_i32_0 : i32 to vector<32x128xi32>
    %6 = arith.cmpi ne, %4, %5 : vector<32x128xi32>
    %c0_i32_1 = arith.constant 0 : i32
    %7 = vector.broadcast %c0_i32_1 : i32 to vector<32x128xi32>
    %8 = arith.cmpi slt, %4, %7 : vector<32x128xi32>
    %c0_i32_2 = arith.constant 0 : i32
    %9 = arith.cmpi slt, %2, %c0_i32_2 : i32
    %10 = vector.broadcast %9 : i1 to vector<32x128xi1>
    %11 = vector.broadcast %10 : vector<32x128xi1> to vector<32x128xi1>
    %12 = arith.xori %8, %11 : vector<32x128xi1>
    %13 = arith.andi %12, %6 : vector<32x128xi1>
    %14 = vector.broadcast %2 : i32 to vector<32x128xi32>
    %15 = arith.addi %4, %14 : vector<32x128xi32>
    %16 = arith.select %13, %15, %4 : vector<32x128xi1>, vector<32x128xi32>
    %c0_i32_3 = arith.constant 0 : i32
    %17 = vector.broadcast %c0_i32_3 : i32 to vector<32x128xi32>
    %18 = arith.cmpi ne, %16, %17 : vector<32x128xi32>
    %c15_i32 = arith.constant 15 : i32
    %19 = vector.broadcast %c15_i32 : i32 to vector<32x128xi32>
    %20 = arith.cmpi ne, %16, %19 : vector<32x128xi32>
    %c0 = arith.constant 0 : index
    %c0_4 = arith.constant 0 : index
    %c0_5 = arith.constant 0 : index
    %21 = vector.load %arg1[%c0, %c0_4, %c0_5] : memref<1x32x128xbf16, #tpu.memory_space<vmem>>, vector<1x32x128xbf16>
    %22 = vector.shape_cast %21 : vector<1x32x128xbf16> to vector<32x128xbf16>
    %23 = arith.extf %22 : vector<32x128xbf16> to vector<32x128xf32>
    %c1_i32_6 = arith.constant 1 : i32
    %24 = tpu.dynamic_rotate %23 by %c1_i32_6 dim 0 : vector<32x128xf32>, i32 -> vector<32x128xf32>
    %cst = arith.constant 0.000000e+00 : f32
    %25 = vector.broadcast %cst : f32 to vector<32x128xf32>
    %26 = arith.select %18, %24, %25 : vector<32x128xi1>, vector<32x128xf32>
    %c31_i32 = arith.constant 31 : i32
    %27 = tpu.dynamic_rotate %23 by %c31_i32 dim 0 : vector<32x128xf32>, i32 -> vector<32x128xf32>
    %cst_7 = arith.constant 0.000000e+00 : f32
    %28 = vector.broadcast %cst_7 : f32 to vector<32x128xf32>
    %29 = arith.select %20, %27, %28 : vector<32x128xi1>, vector<32x128xf32>
    %30 = tpu.concatenate %26, %23, %29 in 1 : vector<32x128xf32>, vector<32x128xf32>, vector<32x128xf32> -> vector<32x384xf32>
    %31 = arith.truncf %30 : vector<32x384xf32> to vector<32x384xbf16>
    %c0_8 = arith.constant 0 : index
    %c0_9 = arith.constant 0 : index
    %c0_10 = arith.constant 0 : index
    %32 = vector.load %arg2[%c0_8, %c0_9, %c0_10] : memref<7x384x128xbf16, #tpu.memory_space<vmem>>, vector<1x384x128xbf16>
    %33 = vector.shape_cast %32 : vector<1x384x128xbf16> to vector<384x128xbf16>
    %cst_11 = arith.constant dense<0.000000e+00> : vector<32x128xf32>
    %34 = tpu.matmul %31, %33, %cst_11 {dimension_numbers = #tpu.dot_dimension_numbers<[1], [0], [0], [1], [0, 0, 1, 1], [], []>} : vector<32x384xbf16>, vector<384x128xbf16>, vector<32x128xf32> -> vector<32x128xf32>
    %c0_12 = arith.constant 0 : index
    %c0_13 = arith.constant 0 : index
    %35 = vector.load %arg3[%c0_12, %c0_13] : memref<7x128xf32, #tpu.memory_space<vmem>>, vector<1x128xf32>
    %c0_14 = arith.constant 0 : index
    %c0_15 = arith.constant 0 : index
    %36 = vector.load %arg4[%c0_14, %c0_15] : memref<7x128xf32, #tpu.memory_space<vmem>>, vector<1x128xf32>
    %37 = vector.broadcast %35 : vector<1x128xf32> to vector<32x128xf32>
    %38 = arith.mulf %34, %37 : vector<32x128xf32>
    %39 = vector.broadcast %36 : vector<1x128xf32> to vector<32x128xf32>
    %40 = arith.addf %38, %39 : vector<32x128xf32>
    %cst_16 = arith.constant 0.000000e+00 : f32
    %41 = vector.broadcast %cst_16 : f32 to vector<32x128xf32>
    %42 = arith.maximumf %40, %41 : vector<32x128xf32>
    %c1_i32_17 = arith.constant 1 : i32
    %43 = tpu.dynamic_rotate %23 by %c1_i32_17 dim 0 : vector<32x128xf32>, i32 -> vector<32x128xf32>
    %cst_18 = arith.constant 0.000000e+00 : f32
    %44 = vector.broadcast %cst_18 : f32 to vector<32x128xf32>
    %45 = arith.select %18, %43, %44 : vector<32x128xi1>, vector<32x128xf32>
    %c31_i32_19 = arith.constant 31 : i32
    %46 = tpu.dynamic_rotate %23 by %c31_i32_19 dim 0 : vector<32x128xf32>, i32 -> vector<32x128xf32>
    %cst_20 = arith.constant 0.000000e+00 : f32
    %47 = vector.broadcast %cst_20 : f32 to vector<32x128xf32>
    %48 = arith.select %20, %46, %47 : vector<32x128xi1>, vector<32x128xf32>
    %49 = tpu.concatenate %45, %23, %48 in 1 : vector<32x128xf32>, vector<32x128xf32>, vector<32x128xf32> -> vector<32x384xf32>
    %50 = arith.truncf %49 : vector<32x384xf32> to vector<32x384xbf16>
    %c1 = arith.constant 1 : index
    %c0_21 = arith.constant 0 : index
    %c0_22 = arith.constant 0 : index
    %51 = vector.load %arg2[%c1, %c0_21, %c0_22] : memref<7x384x128xbf16, #tpu.memory_space<vmem>>, vector<1x384x128xbf16>
    %52 = vector.shape_cast %51 : vector<1x384x128xbf16> to vector<384x128xbf16>
    %cst_23 = arith.constant dense<0.000000e+00> : vector<32x128xf32>
    %53 = tpu.matmul %50, %52, %cst_23 {dimension_numbers = #tpu.dot_dimension_numbers<[1], [0], [0], [1], [0, 0, 1, 1], [], []>} : vector<32x384xbf16>, vector<384x128xbf16>, vector<32x128xf32> -> vector<32x128xf32>
    %c1_24 = arith.constant 1 : index
    %c0_25 = arith.constant 0 : index
    %54 = vector.load %arg3[%c1_24, %c0_25] : memref<7x128xf32, #tpu.memory_space<vmem>>, vector<1x128xf32>
    %c1_26 = arith.constant 1 : index
    %c0_27 = arith.constant 0 : index
    %55 = vector.load %arg4[%c1_26, %c0_27] : memref<7x128xf32, #tpu.memory_space<vmem>>, vector<1x128xf32>
    %56 = vector.broadcast %54 : vector<1x128xf32> to vector<32x128xf32>
    %57 = arith.mulf %53, %56 : vector<32x128xf32>
    %58 = vector.broadcast %55 : vector<1x128xf32> to vector<32x128xf32>
    %59 = arith.addf %57, %58 : vector<32x128xf32>
    %cst_28 = arith.constant 0.000000e+00 : f32
    %60 = vector.broadcast %cst_28 : f32 to vector<32x128xf32>
    %61 = arith.maximumf %59, %60 : vector<32x128xf32>
    %c1_i32_29 = arith.constant 1 : i32
    %62 = tpu.dynamic_rotate %23 by %c1_i32_29 dim 0 : vector<32x128xf32>, i32 -> vector<32x128xf32>
    %cst_30 = arith.constant 0.000000e+00 : f32
    %63 = vector.broadcast %cst_30 : f32 to vector<32x128xf32>
    %64 = arith.select %18, %62, %63 : vector<32x128xi1>, vector<32x128xf32>
    %c31_i32_31 = arith.constant 31 : i32
    %65 = tpu.dynamic_rotate %23 by %c31_i32_31 dim 0 : vector<32x128xf32>, i32 -> vector<32x128xf32>
    %cst_32 = arith.constant 0.000000e+00 : f32
    %66 = vector.broadcast %cst_32 : f32 to vector<32x128xf32>
    %67 = arith.select %20, %65, %66 : vector<32x128xi1>, vector<32x128xf32>
    %68 = tpu.concatenate %64, %23, %67 in 1 : vector<32x128xf32>, vector<32x128xf32>, vector<32x128xf32> -> vector<32x384xf32>
    %69 = arith.truncf %68 : vector<32x384xf32> to vector<32x384xbf16>
    %c3 = arith.constant 3 : index
    %c0_33 = arith.constant 0 : index
    %c0_34 = arith.constant 0 : index
    %70 = vector.load %arg2[%c3, %c0_33, %c0_34] : memref<7x384x128xbf16, #tpu.memory_space<vmem>>, vector<1x384x128xbf16>
    %71 = vector.shape_cast %70 : vector<1x384x128xbf16> to vector<384x128xbf16>
    %cst_35 = arith.constant dense<0.000000e+00> : vector<32x128xf32>
    %72 = tpu.matmul %69, %71, %cst_35 {dimension_numbers = #tpu.dot_dimension_numbers<[1], [0], [0], [1], [0, 0, 1, 1], [], []>} : vector<32x384xbf16>, vector<384x128xbf16>, vector<32x128xf32> -> vector<32x128xf32>
    %c3_36 = arith.constant 3 : index
    %c0_37 = arith.constant 0 : index
    %73 = vector.load %arg3[%c3_36, %c0_37] : memref<7x128xf32, #tpu.memory_space<vmem>>, vector<1x128xf32>
    %c3_38 = arith.constant 3 : index
    %c0_39 = arith.constant 0 : index
    %74 = vector.load %arg4[%c3_38, %c0_39] : memref<7x128xf32, #tpu.memory_space<vmem>>, vector<1x128xf32>
    %75 = vector.broadcast %73 : vector<1x128xf32> to vector<32x128xf32>
    %76 = arith.mulf %72, %75 : vector<32x128xf32>
    %77 = vector.broadcast %74 : vector<1x128xf32> to vector<32x128xf32>
    %78 = arith.addf %76, %77 : vector<32x128xf32>
    %cst_40 = arith.constant 0.000000e+00 : f32
    %79 = vector.broadcast %cst_40 : f32 to vector<32x128xf32>
    %80 = arith.maximumf %78, %79 : vector<32x128xf32>
    %cst_41 = arith.constant 1.000000e+00 : f32
    %81 = vector.broadcast %cst_41 : f32 to vector<32x128xf32>
    %82 = arith.mulf %80, %81 : vector<32x128xf32>
    %c1_i32_42 = arith.constant 1 : i32
    %83 = tpu.dynamic_rotate %82 by %c1_i32_42 dim 0 : vector<32x128xf32>, i32 -> vector<32x128xf32>
    %cst_43 = arith.constant 0.000000e+00 : f32
    %84 = vector.broadcast %cst_43 : f32 to vector<32x128xf32>
    %85 = arith.select %18, %83, %84 : vector<32x128xi1>, vector<32x128xf32>
    %c31_i32_44 = arith.constant 31 : i32
    %86 = tpu.dynamic_rotate %82 by %c31_i32_44 dim 0 : vector<32x128xf32>, i32 -> vector<32x128xf32>
    %cst_45 = arith.constant 0.000000e+00 : f32
    %87 = vector.broadcast %cst_45 : f32 to vector<32x128xf32>
    %88 = arith.select %20, %86, %87 : vector<32x128xi1>, vector<32x128xf32>
    %89 = tpu.concatenate %85, %82, %88 in 1 : vector<32x128xf32>, vector<32x128xf32>, vector<32x128xf32> -> vector<32x384xf32>
    %90 = arith.truncf %89 : vector<32x384xf32> to vector<32x384xbf16>
    %c4 = arith.constant 4 : index
    %c0_46 = arith.constant 0 : index
    %c0_47 = arith.constant 0 : index
    %91 = vector.load %arg2[%c4, %c0_46, %c0_47] : memref<7x384x128xbf16, #tpu.memory_space<vmem>>, vector<1x384x128xbf16>
    %92 = vector.shape_cast %91 : vector<1x384x128xbf16> to vector<384x128xbf16>
    %cst_48 = arith.constant dense<0.000000e+00> : vector<32x128xf32>
    %93 = tpu.matmul %90, %92, %cst_48 {dimension_numbers = #tpu.dot_dimension_numbers<[1], [0], [0], [1], [0, 0, 1, 1], [], []>} : vector<32x384xbf16>, vector<384x128xbf16>, vector<32x128xf32> -> vector<32x128xf32>
    %c4_49 = arith.constant 4 : index
    %c0_50 = arith.constant 0 : index
    %94 = vector.load %arg3[%c4_49, %c0_50] : memref<7x128xf32, #tpu.memory_space<vmem>>, vector<1x128xf32>
    %c4_51 = arith.constant 4 : index
    %c0_52 = arith.constant 0 : index
    %95 = vector.load %arg4[%c4_51, %c0_52] : memref<7x128xf32, #tpu.memory_space<vmem>>, vector<1x128xf32>
    %96 = vector.broadcast %94 : vector<1x128xf32> to vector<32x128xf32>
    %97 = arith.mulf %93, %96 : vector<32x128xf32>
    %98 = vector.broadcast %95 : vector<1x128xf32> to vector<32x128xf32>
    %99 = arith.addf %97, %98 : vector<32x128xf32>
    %cst_53 = arith.constant 0.000000e+00 : f32
    %100 = vector.broadcast %cst_53 : f32 to vector<32x128xf32>
    %101 = arith.maximumf %99, %100 : vector<32x128xf32>
    %102 = arith.addf %61, %101 : vector<32x128xf32>
    %cst_54 = arith.constant 5.000000e-01 : f32
    %103 = vector.broadcast %cst_54 : f32 to vector<32x128xf32>
    %104 = arith.mulf %102, %103 : vector<32x128xf32>
    %c1_i32_55 = arith.constant 1 : i32
    %105 = tpu.dynamic_rotate %104 by %c1_i32_55 dim 0 : vector<32x128xf32>, i32 -> vector<32x128xf32>
    %cst_56 = arith.constant 0.000000e+00 : f32
    %106 = vector.broadcast %cst_56 : f32 to vector<32x128xf32>
    %107 = arith.select %18, %105, %106 : vector<32x128xi1>, vector<32x128xf32>
    %c31_i32_57 = arith.constant 31 : i32
    %108 = tpu.dynamic_rotate %104 by %c31_i32_57 dim 0 : vector<32x128xf32>, i32 -> vector<32x128xf32>
    %cst_58 = arith.constant 0.000000e+00 : f32
    %109 = vector.broadcast %cst_58 : f32 to vector<32x128xf32>
    %110 = arith.select %20, %108, %109 : vector<32x128xi1>, vector<32x128xf32>
    %111 = tpu.concatenate %107, %104, %110 in 1 : vector<32x128xf32>, vector<32x128xf32>, vector<32x128xf32> -> vector<32x384xf32>
    %112 = arith.truncf %111 : vector<32x384xf32> to vector<32x384xbf16>
    %c2 = arith.constant 2 : index
    %c0_59 = arith.constant 0 : index
    %c0_60 = arith.constant 0 : index
    %113 = vector.load %arg2[%c2, %c0_59, %c0_60] : memref<7x384x128xbf16, #tpu.memory_space<vmem>>, vector<1x384x128xbf16>
    %114 = vector.shape_cast %113 : vector<1x384x128xbf16> to vector<384x128xbf16>
    %cst_61 = arith.constant dense<0.000000e+00> : vector<32x128xf32>
    %115 = tpu.matmul %112, %114, %cst_61 {dimension_numbers = #tpu.dot_dimension_numbers<[1], [0], [0], [1], [0, 0, 1, 1], [], []>} : vector<32x384xbf16>, vector<384x128xbf16>, vector<32x128xf32> -> vector<32x128xf32>
    %c2_62 = arith.constant 2 : index
    %c0_63 = arith.constant 0 : index
    %116 = vector.load %arg3[%c2_62, %c0_63] : memref<7x128xf32, #tpu.memory_space<vmem>>, vector<1x128xf32>
    %c2_64 = arith.constant 2 : index
    %c0_65 = arith.constant 0 : index
    %117 = vector.load %arg4[%c2_64, %c0_65] : memref<7x128xf32, #tpu.memory_space<vmem>>, vector<1x128xf32>
    %118 = vector.broadcast %116 : vector<1x128xf32> to vector<32x128xf32>
    %119 = arith.mulf %115, %118 : vector<32x128xf32>
    %120 = vector.broadcast %117 : vector<1x128xf32> to vector<32x128xf32>
    %121 = arith.addf %119, %120 : vector<32x128xf32>
    %cst_66 = arith.constant 0.000000e+00 : f32
    %122 = vector.broadcast %cst_66 : f32 to vector<32x128xf32>
    %123 = arith.maximumf %121, %122 : vector<32x128xf32>
    %c1_i32_67 = arith.constant 1 : i32
    %124 = tpu.dynamic_rotate %104 by %c1_i32_67 dim 0 : vector<32x128xf32>, i32 -> vector<32x128xf32>
    %cst_68 = arith.constant 0.000000e+00 : f32
    %125 = vector.broadcast %cst_68 : f32 to vector<32x128xf32>
    %126 = arith.select %18, %124, %125 : vector<32x128xi1>, vector<32x128xf32>
    %c31_i32_69 = arith.constant 31 : i32
    %127 = tpu.dynamic_rotate %104 by %c31_i32_69 dim 0 : vector<32x128xf32>, i32 -> vector<32x128xf32>
    %cst_70 = arith.constant 0.000000e+00 : f32
    %128 = vector.broadcast %cst_70 : f32 to vector<32x128xf32>
    %129 = arith.select %20, %127, %128 : vector<32x128xi1>, vector<32x128xf32>
    %130 = tpu.concatenate %126, %104, %129 in 1 : vector<32x128xf32>, vector<32x128xf32>, vector<32x128xf32> -> vector<32x384xf32>
    %131 = arith.truncf %130 : vector<32x384xf32> to vector<32x384xbf16>
    %c5 = arith.constant 5 : index
    %c0_71 = arith.constant 0 : index
    %c0_72 = arith.constant 0 : index
    %132 = vector.load %arg2[%c5, %c0_71, %c0_72] : memref<7x384x128xbf16, #tpu.memory_space<vmem>>, vector<1x384x128xbf16>
    %133 = vector.shape_cast %132 : vector<1x384x128xbf16> to vector<384x128xbf16>
    %cst_73 = arith.constant dense<0.000000e+00> : vector<32x128xf32>
    %134 = tpu.matmul %131, %133, %cst_73 {dimension_numbers = #tpu.dot_dimension_numbers<[1], [0], [0], [1], [0, 0, 1, 1], [], []>} : vector<32x384xbf16>, vector<384x128xbf16>, vector<32x128xf32> -> vector<32x128xf32>
    %c5_74 = arith.constant 5 : index
    %c0_75 = arith.constant 0 : index
    %135 = vector.load %arg3[%c5_74, %c0_75] : memref<7x128xf32, #tpu.memory_space<vmem>>, vector<1x128xf32>
    %c5_76 = arith.constant 5 : index
    %c0_77 = arith.constant 0 : index
    %136 = vector.load %arg4[%c5_76, %c0_77] : memref<7x128xf32, #tpu.memory_space<vmem>>, vector<1x128xf32>
    %137 = vector.broadcast %135 : vector<1x128xf32> to vector<32x128xf32>
    %138 = arith.mulf %134, %137 : vector<32x128xf32>
    %139 = vector.broadcast %136 : vector<1x128xf32> to vector<32x128xf32>
    %140 = arith.addf %138, %139 : vector<32x128xf32>
    %cst_78 = arith.constant 0.000000e+00 : f32
    %141 = vector.broadcast %cst_78 : f32 to vector<32x128xf32>
    %142 = arith.maximumf %140, %141 : vector<32x128xf32>
    %cst_79 = arith.constant 1.000000e+00 : f32
    %143 = vector.broadcast %cst_79 : f32 to vector<32x128xf32>
    %144 = arith.mulf %142, %143 : vector<32x128xf32>
    %c1_i32_80 = arith.constant 1 : i32
    %145 = tpu.dynamic_rotate %144 by %c1_i32_80 dim 0 : vector<32x128xf32>, i32 -> vector<32x128xf32>
    %cst_81 = arith.constant 0.000000e+00 : f32
    %146 = vector.broadcast %cst_81 : f32 to vector<32x128xf32>
    %147 = arith.select %18, %145, %146 : vector<32x128xi1>, vector<32x128xf32>
    %c31_i32_82 = arith.constant 31 : i32
    %148 = tpu.dynamic_rotate %144 by %c31_i32_82 dim 0 : vector<32x128xf32>, i32 -> vector<32x128xf32>
    %cst_83 = arith.constant 0.000000e+00 : f32
    %149 = vector.broadcast %cst_83 : f32 to vector<32x128xf32>
    %150 = arith.select %20, %148, %149 : vector<32x128xi1>, vector<32x128xf32>
    %151 = tpu.concatenate %147, %144, %150 in 1 : vector<32x128xf32>, vector<32x128xf32>, vector<32x128xf32> -> vector<32x384xf32>
    %152 = arith.truncf %151 : vector<32x384xf32> to vector<32x384xbf16>
    %c6 = arith.constant 6 : index
    %c0_84 = arith.constant 0 : index
    %c0_85 = arith.constant 0 : index
    %153 = vector.load %arg2[%c6, %c0_84, %c0_85] : memref<7x384x128xbf16, #tpu.memory_space<vmem>>, vector<1x384x128xbf16>
    %154 = vector.shape_cast %153 : vector<1x384x128xbf16> to vector<384x128xbf16>
    %cst_86 = arith.constant dense<0.000000e+00> : vector<32x128xf32>
    %155 = tpu.matmul %152, %154, %cst_86 {dimension_numbers = #tpu.dot_dimension_numbers<[1], [0], [0], [1], [0, 0, 1, 1], [], []>} : vector<32x384xbf16>, vector<384x128xbf16>, vector<32x128xf32> -> vector<32x128xf32>
    %c6_87 = arith.constant 6 : index
    %c0_88 = arith.constant 0 : index
    %156 = vector.load %arg3[%c6_87, %c0_88] : memref<7x128xf32, #tpu.memory_space<vmem>>, vector<1x128xf32>
    %c6_89 = arith.constant 6 : index
    %c0_90 = arith.constant 0 : index
    %157 = vector.load %arg4[%c6_89, %c0_90] : memref<7x128xf32, #tpu.memory_space<vmem>>, vector<1x128xf32>
    %158 = vector.broadcast %156 : vector<1x128xf32> to vector<32x128xf32>
    %159 = arith.mulf %155, %158 : vector<32x128xf32>
    %160 = vector.broadcast %157 : vector<1x128xf32> to vector<32x128xf32>
    %161 = arith.addf %159, %160 : vector<32x128xf32>
    %cst_91 = arith.constant 0.000000e+00 : f32
    %162 = vector.broadcast %cst_91 : f32 to vector<32x128xf32>
    %163 = arith.maximumf %161, %162 : vector<32x128xf32>
    %164 = arith.addf %123, %163 : vector<32x128xf32>
    %165 = arith.addf %42, %164 : vector<32x128xf32>
    %cst_92 = arith.constant 0.333333343 : f32
    %166 = vector.broadcast %cst_92 : f32 to vector<32x128xf32>
    %167 = arith.mulf %165, %166 : vector<32x128xf32>
    %c0_93 = arith.constant 0 : index
    %c0_94 = arith.constant 0 : index
    %c0_95 = arith.constant 0 : index
    %168 = vector.load %arg5[%c0_93, %c0_94, %c0_95] : memref<1x32x128xf32, #tpu.memory_space<vmem>>, vector<1x32x128xf32>
    %169 = vector.shape_cast %168 : vector<1x32x128xf32> to vector<32x128xf32>
    %170 = vector.shape_cast %167 : vector<32x128xf32> to vector<1x32x128xf32>
    tpu.vector_store %arg5[%c0_93, %c0_94, %c0_95], %170 {strides = array<i32>} : memref<1x32x128xf32, #tpu.memory_space<vmem>>, vector<1x32x128xf32>,
    return
  }
  func.func @transform_0(%arg0: i32) -> (i32, i32, i32) {
    %c0_i32 = arith.constant 0 : i32
    %c0_i32_0 = arith.constant 0 : i32
    %c0_i32_1 = arith.constant 0 : i32
    return %arg0, %c0_i32, %c0_i32_0 : i32, i32, i32
  }
  func.func @transform_1(%arg0: i32) -> (i32, i32, i32) {
    %c0_i32 = arith.constant 0 : i32
    %c0_i32_0 = arith.constant 0 : i32
    %c0_i32_1 = arith.constant 0 : i32
    %c0_i32_2 = arith.constant 0 : i32
    return %c0_i32, %c0_i32_0, %c0_i32_1 : i32, i32, i32
  }
  func.func @transform_2(%arg0: i32) -> (i32, i32) {
    %c0_i32 = arith.constant 0 : i32
    %c0_i32_0 = arith.constant 0 : i32
    %c0_i32_1 = arith.constant 0 : i32
    return %c0_i32, %c0_i32_0 : i32, i32
  }
  func.func @transform_3(%arg0: i32) -> (i32, i32) {
    %c0_i32 = arith.constant 0 : i32
    %c0_i32_0 = arith.constant 0 : i32
    %c0_i32_1 = arith.constant 0 : i32
    return %c0_i32, %c0_i32_0 : i32, i32
  }
  func.func @transform_4(%arg0: i32) -> (i32, i32, i32) {
    %c0_i32 = arith.constant 0 : i32
    %c0_i32_0 = arith.constant 0 : i32
    %c0_i32_1 = arith.constant 0 : i32
    return %arg0, %c0_i32, %c0_i32_0 : i32, i32, i32
  }
}

</mosaic_0001>

<llo_original>
// kernel: fwd.1
$region0: #{fwd.1}
  #allocation0 [shape = 'u32[]', space=smem, size = 0x4, offset = 0x4, fixed_abs, tag = 'smem constant byte address 0x4 - core index']
  #allocation1 [shape = 'u32[144,128]{1,0:T(1,128)}', space=vmem, size = 0x12000, scoped, tag = 'internal scratch']
  %s0 = inlined_call_operand.vmem [shape: bf16[1,32,128], index: 0, kind: input, shape index: {}]
  %s1 = inlined_call_operand.hbm [shape: bf16[7,384,128], index: 1, kind: input, shape index: {}]
  %s2 = inlined_call_operand.vmem [shape: f32[7,128], index: 2, kind: input, shape index: {}]
  %s3 = inlined_call_operand.vmem [shape: f32[7,128], index: 3, kind: input, shape index: {}]
  %s4 = inlined_call_operand.vmem [shape: f32[1,32,128], index: 4, kind: output, shape index: {}]
  %s5 = sld [smem:[#allocation0]]
  $region30: #{fwd.1} parent=0
    _
  %s7 = ssub.s32 1, %s5
  %s8 = scalar_select 0, %s7, %s5
  $region1: #{fwd.1} parent=0
    #allocation2 [shape = 'u8[688128]{0}', space=vmem, size = 0xa8000, scoped, tag = 'input window, operand 1, single buffered']
    #allocation3 [shape = 's32[1]{0}', space=sflag, size = 0x4, scoped, tag = 'scoped memory for fwd.1']
    %9 = vsyncpa [#allocation3], 0
    // Predicated region
    $region2: #{fwd.1} parent=1 // pred_check
      _
    $region3: #{fwd.1} parent=1 // pred_check_branch
      %11 = sbr.rel (0) target = $region5
    $region4: #{fwd.1} parent=1 // pred_region
      _
    $region5: #{fwd.1} parent=1 // pred_fallthru
      _
    // Predicated region
    $region6: #{fwd.1} parent=1 // pred_check
      _
    $region7: #{fwd.1} parent=1 // pred_check_branch
      %13 = sbr.rel (0) target = $region9
    $region8: #{fwd.1} parent=1 // pred_region
      %s15 = ssub.s32 21504, 21504
      %16 = vsyncadd [#allocation3], %s15
      %s17 = sshll.u32 [#allocation2], 4
      %s18 = int_to_ptr.vmem [resolvable:$true] %s17
      %23 = dma.hbm_to_vmem [thread:$0]  %s1, 21504, %s18, [#allocation3], 64, 64, 4
    $region9: #{fwd.1} parent=1 // pred_fallthru
      _
    // Predicated region
    $region10: #{fwd.1} parent=1 // pred_check
      _
    $region11: #{fwd.1} parent=1 // pred_check_branch
      %25 = sbr.rel (0) target = $region13
    $region12: #{fwd.1} parent=1 // pred_region
      _
    $region13: #{fwd.1} parent=1 // pred_fallthru
      _
    // Predicated region
    $region14: #{fwd.1} parent=1 // pred_check
      _
    $region15: #{fwd.1} parent=1 // pred_check_branch
      %27 = sbr.rel (0) target = $region17
    $region16: #{fwd.1} parent=1 // pred_region
      _
    $region17: #{fwd.1} parent=1 // pred_fallthru
      _
    // Predicated region
    $region18: #{fwd.1} parent=1 // pred_check
      _
    $region19: #{fwd.1} parent=1 // pred_check_branch
      %29 = sbr.rel (0) target = $region21
    $region20: #{fwd.1} parent=1 // pred_region
      %30 = dma.done [#allocation3], 21504
    $region21: #{fwd.1} parent=1 // pred_fallthru
      _
    %v32 = vlaneseq
    %v33 = vshrl.u32 %v32, 7
    %v34 = vadd.s32 %v33, 8
    %v35 = vadd.s32 %v33, 16
    %v36 = vadd.s32 %v33, 24
    %vm37 = vcmp.lt.s32.totalorder %v33, 0
    %v38 = vsub.s32 0, %v33
    %v39 = vsel %vm37, %v38, %v33
    %v40 = vshrl.u32 %v39, 4
    %v41 = vand.u32 %v39, 15
    %v42 = vsub.s32 0, %v41
    %v43 = vsel %vm37, %v42, %v41
    %vm44 = vcmp.lt.s32.totalorder %v34, 0
    %v45 = vsub.s32 0, %v34
    %v46 = vsel %vm44, %v45, %v34
    %v47 = vshrl.u32 %v46, 4
    %v48 = vand.u32 %v46, 15
    %v49 = vsub.s32 0, %v48
    %v50 = vsel %vm44, %v49, %v48
    %vm51 = vcmp.lt.s32.totalorder %v35, 0
    %v52 = vsub.s32 0, %v35
    %v53 = vsel %vm51, %v52, %v35
    %v54 = vshrl.u32 %v53, 4
    %v55 = vand.u32 %v53, 15
    %v56 = vsub.s32 0, %v55
    %v57 = vsel %vm51, %v56, %v55
    %vm58 = vcmp.lt.s32.totalorder %v36, 0
    %v59 = vsub.s32 0, %v36
    %v60 = vsel %vm58, %v59, %v36
    %v61 = vshrl.u32 %v60, 4
    %v62 = vand.u32 %v60, 15
    %v63 = vsub.s32 0, %v62
    %v64 = vsel %vm58, %v63, %v62
    %vm65 = vcmp.ne.s32.totalorder %v43, 0
    %vm66 = vcmp.ne.s32.totalorder %v50, 0
    %vm67 = vcmp.ne.s32.totalorder %v57, 0
    %vm68 = vcmp.ne.s32.totalorder %v64, 0
    %vm69 = vcmp.lt.s32.totalorder %v43, 0
    %vm70 = vcmp.lt.s32.totalorder %v50, 0
    %vm71 = vcmp.lt.s32.totalorder %v57, 0
    %vm72 = vcmp.lt.s32.totalorder %v64, 0
    %vm73 = vmand %vm69, %vm65
    %vm74 = vmand %vm70, %vm66
    %vm75 = vmand %vm71, %vm67
    %vm76 = vmand %vm72, %vm68
    %v77 = vadd.s32 %v43, 16
    %v78 = vadd.s32 %v50, 16
    %v79 = vadd.s32 %v57, 16
    %v80 = vadd.s32 %v64, 16
    %v81 = vsel %vm73, %v77, %v43
    %v82 = vsel %vm74, %v78, %v50
    %v83 = vsel %vm75, %v79, %v57
    %v84 = vsel %vm76, %v80, %v64
    %vm85 = vcmp.ne.s32.totalorder %v81, 0
    %vm86 = vcmp.ne.s32.totalorder %v82, 0
    %vm87 = vcmp.ne.s32.totalorder %v83, 0
    %vm88 = vcmp.ne.s32.totalorder %v84, 0
    %vm89 = vcmp.ne.s32.totalorder %v81, 15
    %vm90 = vcmp.ne.s32.totalorder %v82, 15
    %vm91 = vcmp.ne.s32.totalorder %v83, 15
    %vm92 = vcmp.ne.s32.totalorder %v84, 15
    %v93 = vld [vmem:[%s0] sm:$0xf]
    %v94 = vld [vmem:[%s0 + $0x4] sm:$0xf]
    %v95 = vld [vmem:[%s0 + $0x8] sm:$0xf]
    %v96 = vld [vmem:[%s0 + $0xc] sm:$0xf]
    %v97 = vunpack.c.l.bf16 %v93
    %v98 = vunpack.c.l.bf16 %v94
    %v99 = vunpack.c.l.bf16 %v95
    %v100 = vunpack.c.l.bf16 %v96
    %v101 = vrot.slane %v97, 7
    %v102 = vrot.slane %v98, 7
    %v103 = vrot.slane %v99, 7
    %v104 = vrot.slane %v100, 7
    %vm105 = vcmp.lt.s32.totalorder %v33, 1
    %v106 = vsel %vm105, %v103, %v104
    %v107 = vsel %vm105, %v102, %v103
    %v108 = vsel %vm105, %v101, %v102
    %v109 = vsel %vm105, %v104, %v101
    %v110 = vsel %vm85, %v109, 0.0
    %v111 = vsel %vm86, %v108, 0.0
    %v112 = vsel %vm87, %v107, 0.0
    %v113 = vsel %vm88, %v106, 0.0
    %v114 = vrot.slane %v97, 1
    %v115 = vrot.slane %v98, 1
    %v116 = vrot.slane %v99, 1
    %v117 = vrot.slane %v100, 1
    %vm118 = vcmp.lt.s32.totalorder %v33, 7
    %v119 = vsel %vm118, %v116, %v117
    %v120 = vsel %vm118, %v115, %v116
    %v121 = vsel %vm118, %v114, %v115
    %v122 = vsel %vm118, %v117, %v114
    %v123 = vsel %vm89, %v121, 0.0
    %v124 = vsel %vm90, %v120, 0.0
    %v125 = vsel %vm91, %v119, 0.0
    %v126 = vsel %vm92, %v122, 0.0
    %v127 = vpack.c.bf16 %v111, %v110
    %v128 = vpack.c.bf16 %v98, %v97
    %v129 = vpack.c.bf16 %v124, %v123
    %v130 = vpack.c.bf16 %v113, %v112
    %v131 = vpack.c.bf16 %v100, %v99
    %v132 = vpack.c.bf16 %v126, %v125
    %v133 = vld [vmem:[#allocation2] sm:$0xf]
    %v134 = vld [vmem:[#allocation2 + $0x4] sm:$0xf]
    %v135 = vld [vmem:[#allocation2 + $0x8] sm:$0xf]
    %v136 = vld [vmem:[#allocation2 + $0xc] sm:$0xf]
    %v137 = vld [vmem:[#allocation2 + $0x10] sm:$0xf]
    %v138 = vld [vmem:[#allocation2 + $0x14] sm:$0xf]
    %v139 = vld [vmem:[#allocation2 + $0x18] sm:$0xf]
    %v140 = vld [vmem:[#allocation2 + $0x1c] sm:$0xf]
    %v141 = vld [vmem:[#allocation2 + $0x20] sm:$0xf]
    %v142 = vld [vmem:[#allocation2 + $0x24] sm:$0xf]
    %v143 = vld [vmem:[#allocation2 + $0x28] sm:$0xf]
    %v144 = vld [vmem:[#allocation2 + $0x2c] sm:$0xf]
    %v145 = vld [vmem:[#allocation2 + $0x30] sm:$0xf]
    %v146 = vld [vmem:[#allocation2 + $0x34] sm:$0xf]
    %v147 = vld [vmem:[#allocation2 + $0x38] sm:$0xf]
    %v148 = vld [vmem:[#allocation2 + $0x3c] sm:$0xf]
    %v149 = vld [vmem:[#allocation2 + $0x40] sm:$0xf]
    %v150 = vld [vmem:[#allocation2 + $0x44] sm:$0xf]
    %v151 = vld [vmem:[#allocation2 + $0x48] sm:$0xf]
    %v152 = vld [vmem:[#allocation2 + $0x4c] sm:$0xf]
    %v153 = vld [vmem:[#allocation2 + $0x50] sm:$0xf]
    %v154 = vld [vmem:[#allocation2 + $0x54] sm:$0xf]
    %v155 = vld [vmem:[#allocation2 + $0x58] sm:$0xf]
    %v156 = vld [vmem:[#allocation2 + $0x5c] sm:$0xf]
    %v157 = vld [vmem:[#allocation2 + $0x60] sm:$0xf]
    %v158 = vld [vmem:[#allocation2 + $0x64] sm:$0xf]
    %v159 = vld [vmem:[#allocation2 + $0x68] sm:$0xf]
    %v160 = vld [vmem:[#allocation2 + $0x6c] sm:$0xf]
    %v161 = vld [vmem:[#allocation2 + $0x70] sm:$0xf]
    %v162 = vld [vmem:[#allocation2 + $0x74] sm:$0xf]
    %v163 = vld [vmem:[#allocation2 + $0x78] sm:$0xf]
    %v164 = vld [vmem:[#allocation2 + $0x7c] sm:$0xf]
    %v165 = vld [vmem:[#allocation2 + $0x80] sm:$0xf]
    %v166 = vld [vmem:[#allocation2 + $0x84] sm:$0xf]
    %v167 = vld [vmem:[#allocation2 + $0x88] sm:$0xf]
    %v168 = vld [vmem:[#allocation2 + $0x8c] sm:$0xf]
    %v169 = vld [vmem:[#allocation2 + $0x90] sm:$0xf]
    %v170 = vld [vmem:[#allocation2 + $0x94] sm:$0xf]
    %v171 = vld [vmem:[#allocation2 + $0x98] sm:$0xf]
    %v172 = vld [vmem:[#allocation2 + $0x9c] sm:$0xf]
    %v173 = vld [vmem:[#allocation2 + $0xa0] sm:$0xf]
    %v174 = vld [vmem:[#allocation2 + $0xa4] sm:$0xf]
    %v175 = vld [vmem:[#allocation2 + $0xa8] sm:$0xf]
    %v176 = vld [vmem:[#allocation2 + $0xac] sm:$0xf]
    %v177 = vld [vmem:[#allocation2 + $0xb0] sm:$0xf]
    %v178 = vld [vmem:[#allocation2 + $0xb4] sm:$0xf]
    %v179 = vld [vmem:[#allocation2 + $0xb8] sm:$0xf]
    %v180 = vld [vmem:[#allocation2 + $0xbc] sm:$0xf]
    %v229 = vunpack.c.l.b16 %v133
    %v230 = vunpack.c.l.b16 %v134
    %v231 = vunpack.c.l.b16 %v135
    %v232 = vunpack.c.l.b16 %v136
    %v233 = vunpack.c.l.b16 %v137
    %v234 = vunpack.c.l.b16 %v138
    %v235 = vunpack.c.l.b16 %v139
    %v236 = vunpack.c.l.b16 %v140
    %v237 = vunpack.c.l.b16 %v141
    %v238 = vunpack.c.l.b16 %v142
    %v239 = vunpack.c.l.b16 %v143
    %v240 = vunpack.c.l.b16 %v144
    %v241 = vunpack.c.l.b16 %v145
    %v242 = vunpack.c.l.b16 %v146
    %v243 = vunpack.c.l.b16 %v147
    %v244 = vunpack.c.l.b16 %v148
    %v245 = vunpack.c.l.b16 %v149
    %v246 = vunpack.c.l.b16 %v150
    %v247 = vunpack.c.l.b16 %v151
    %v248 = vunpack.c.l.b16 %v152
    %v249 = vunpack.c.l.b16 %v153
    %v250 = vunpack.c.l.b16 %v154
    %v251 = vunpack.c.l.b16 %v155
    %v252 = vunpack.c.l.b16 %v156
    %v253 = vunpack.c.l.b16 %v157
    %v254 = vunpack.c.l.b16 %v158
    %v255 = vunpack.c.l.b16 %v159
    %v256 = vunpack.c.l.b16 %v160
    %v257 = vunpack.c.l.b16 %v161
    %v258 = vunpack.c.l.b16 %v162
    %v259 = vunpack.c.l.b16 %v163
    %v260 = vunpack.c.l.b16 %v164
    %v261 = vunpack.c.l.b16 %v165
    %v262 = vunpack.c.l.b16 %v166
    %v263 = vunpack.c.l.b16 %v167
    %v264 = vunpack.c.l.b16 %v168
    %v265 = vunpack.c.l.b16 %v169
    %v266 = vunpack.c.l.b16 %v170
    %v267 = vunpack.c.l.b16 %v171
    %v268 = vunpack.c.l.b16 %v172
    %v269 = vunpack.c.l.b16 %v173
    %v270 = vunpack.c.l.b16 %v174
    %v271 = vunpack.c.l.b16 %v175
    %v272 = vunpack.c.l.b16 %v176
    %v273 = vunpack.c.l.b16 %v177
    %v274 = vunpack.c.l.b16 %v178
    %v275 = vunpack.c.l.b16 %v179
    %v276 = vunpack.c.l.b16 %v180
    %v277 = vpack.c.b16 %v230, %v229
    %v278 = vpack.c.b16 %v232, %v231
    %v279 = vpack.c.b16 %v234, %v233
    %v280 = vpack.c.b16 %v236, %v235
    %v281 = vpack.c.b16 %v238, %v237
    %v282 = vpack.c.b16 %v240, %v239
    %v283 = vpack.c.b16 %v242, %v241
    %v284 = vpack.c.b16 %v244, %v243
    %v285 = vpack.c.b16 %v246, %v245
    %v286 = vpack.c.b16 %v248, %v247
    %v287 = vpack.c.b16 %v250, %v249
    %v288 = vpack.c.b16 %v252, %v251
    %v289 = vpack.c.b16 %v254, %v253
    %v290 = vpack.c.b16 %v256, %v255
    %v291 = vpack.c.b16 %v258, %v257
    %v292 = vpack.c.b16 %v260, %v259
    %v293 = vpack.c.b16 %v262, %v261
    %v294 = vpack.c.b16 %v264, %v263
    %v295 = vpack.c.b16 %v266, %v265
    %v296 = vpack.c.b16 %v268, %v267
    %v297 = vpack.c.b16 %v270, %v269
    %v298 = vpack.c.b16 %v272, %v271
    %v299 = vpack.c.b16 %v274, %v273
    %v300 = vpack.c.b16 %v276, %v275
    %325 = vmatprep.subr.bf16.mxu0 0
    %326 = vmatpush1.bf16.msra.mxu0 %v277
    %327 = vmatprep.subr.bf16.mxu0 0
    %328 = vmatpush1.bf16.msra.mxu0 %v278
    %329 = vmatprep.subr.bf16.mxu0 0
    %330 = vmatpush1.bf16.msra.mxu0 %v279
    %331 = vmatprep.subr.bf16.mxu0 0
    %332 = vmatpush1.bf16.msra.mxu0 %v280
    %333 = vmatprep.subr.bf16.mxu0 0
    %334 = vmatpush1.bf16.msra.mxu0 %v281
    %335 = vmatprep.subr.bf16.mxu0 0
    %336 = vmatpush1.bf16.msra.mxu0 %v282
    %337 = vmatprep.subr.bf16.mxu0 0
    %338 = vmatpush1.bf16.msra.mxu0 %v283
    %339 = vmatprep.subr.bf16.mxu0 0
    %340 = vmatpush1.bf16.msra.mxu0 %v284
    %341 = vmatprep.subr.bf16.mxu0 0
    %342 = vmatpush1.bf16.msra.mxu0 %v285
    %343 = vmatprep.subr.bf16.mxu0 0
    %344 = vmatpush1.bf16.msra.mxu0 %v286
    %345 = vmatprep.subr.bf16.mxu0 0
    %346 = vmatpush1.bf16.msra.mxu0 %v287
    %347 = vmatprep.subr.bf16.mxu0 0
    %348 = vmatpush1.bf16.msra.mxu0 %v288
    %349 = vmatprep.subr.bf16.mxu0 0
    %350 = vmatpush1.bf16.msra.mxu0 %v289
    %351 = vmatprep.subr.bf16.mxu0 0
    %352 = vmatpush1.bf16.msra.mxu0 %v290
    %353 = vmatprep.subr.bf16.mxu0 0
    %354 = vmatpush1.bf16.msra.mxu0 %v291
    %355 = vmatprep.subr.bf16.mxu0 0
    %356 = vmatpush1.bf16.msra.mxu0 %v292
    %357 = vmatprep.mubr.bf16.mxu0 %v128
    %358 = vmatmul.mubr.bf16.gmra.mrb[0].mxu0 %v127
    %v359 = vpop.f32.mrb[0].mxu0
    %v360 = vadd.f32 0.0, %v359
    %v361 = vpop.f32.mrb[0].mxu0
    %v362 = vpop.f32.mrb[0].mxu0
    %v363 = vadd.f32 0.0, %v362
    %v364 = vpop.f32.mrb[0].mxu0
    %365 = vmatprep.mubr.bf16.mxu0 %v131
    %366 = vmatmul.mubr.bf16.gmra.mrb[0].mxu0 %v130
    %v367 = vpop.f32.mrb[0].mxu0
    %v368 = vadd.f32 0.0, %v367
    %v369 = vpop.f32.mrb[0].mxu0
    %v370 = vpop.f32.mrb[0].mxu0
    %v371 = vadd.f32 0.0, %v370
    %v372 = vpop.f32.mrb[0].mxu0
    %373 = vdwg.mxu0
    %374 = vmatprep.subr.bf16.mxu0 0
    %375 = vmatpush1.bf16.msra.mxu0 %v293
    %376 = vmatprep.subr.bf16.mxu0 0
    %377 = vmatpush1.bf16.msra.mxu0 %v294
    %378 = vmatprep.subr.bf16.mxu0 0
    %379 = vmatpush1.bf16.msra.mxu0 %v295
    %380 = vmatprep.subr.bf16.mxu0 0
    %381 = vmatpush1.bf16.msra.mxu0 %v296
    %382 = vmatprep.subr.bf16.mxu0 0
    %383 = vmatpush1.bf16.msra.mxu0 %v297
    %384 = vmatprep.subr.bf16.mxu0 0
    %385 = vmatpush1.bf16.msra.mxu0 %v298
    %386 = vmatprep.subr.bf16.mxu0 0
    %387 = vmatpush1.bf16.msra.mxu0 %v299
    %388 = vmatprep.subr.bf16.mxu0 0
    %389 = vmatpush1.bf16.msra.mxu0 %v300
    %390 = vmatprep.subr.bf16.mxu0 0
    %391 = vmatpush1.bf16.msra.mxu0 0
    %392 = vmatprep.subr.bf16.mxu0 0
    %393 = vmatpush1.bf16.msra.mxu0 0
    %394 = vmatprep.subr.bf16.mxu0 0
    %395 = vmatpush1.bf16.msra.mxu0 0
    %396 = vmatprep.subr.bf16.mxu0 0
    %397 = vmatpush1.bf16.msra.mxu0 0
    %398 = vmatprep.subr.bf16.mxu0 0
    %399 = vmatpush1.bf16.msra.mxu0 0
    %400 = vmatprep.subr.bf16.mxu0 0
    %401 = vmatpush1.bf16.msra.mxu0 0
    %402 = vmatprep.subr.bf16.mxu0 0
    %403 = vmatpush1.bf16.msra.mxu0 0
    %404 = vmatprep.subr.bf16.mxu0 0
    %405 = vmatpush1.bf16.msra.mxu0 0
    %406 = vmatprep.mubr.bf16.mxu0 0
    %407 = vmatmul.mubr.bf16.gmra.mrb[0].mxu0 %v129
    %v408 = vpop.f32.mrb[0].mxu0
    %v409 = vadd.f32 %v360, %v408
    %v410 = vpop.f32.mrb[0].mxu0
    %v411 = vpop.f32.mrb[0].mxu0
    %v412 = vadd.f32 %v363, %v411
    %v413 = vpop.f32.mrb[0].mxu0
    %414 = vmatprep.mubr.bf16.mxu0 0
    %415 = vmatmul.mubr.bf16.gmra.mrb[0].mxu0 %v132
    %v416 = vpop.f32.mrb[0].mxu0
    %v417 = vadd.f32 %v368, %v416
    %v418 = vpop.f32.mrb[0].mxu0
    %v419 = vpop.f32.mrb[0].mxu0
    %v420 = vadd.f32 %v371, %v419
    %v421 = vpop.f32.mrb[0].mxu0
    %422 = vdwg.mxu0
    %v423 = vld [vmem:[%s2] sm:$0x1]
    %v424 = vld [vmem:[%s3] sm:$0x1]
    %v425 = vlaneseq
    %v426 = vshrl.u32 %v425, 7
    %v427 = vsub.s32 0, %v426
    %v428 = vrot.slane %v423, %v427
    %v429 = vmul.f32 %v409, %v428
    %v430 = vmul.f32 %v412, %v428
    %v431 = vmul.f32 %v417, %v428
    %v432 = vmul.f32 %v420, %v428
    %v433 = vlaneseq
    %v434 = vshrl.u32 %v433, 7
    %v435 = vsub.s32 0, %v434
    %v436 = vrot.slane %v424, %v435
    %v437 = vadd.f32 %v429, %v436
    %v438 = vadd.f32 %v430, %v436
    %v439 = vadd.f32 %v431, %v436
    %v440 = vadd.f32 %v432, %v436
    %v441 = vmax.f32 %v437, 0.0
    %v442 = vmax.f32 %v438, 0.0
    %v443 = vmax.f32 %v439, 0.0
    %v444 = vmax.f32 %v440, 0.0
    %s445 = scalar_lea.vmem [#allocation2], 192
    %v446 = vld [vmem:[%s445] sm:$0xf]
    %v447 = vld [vmem:[%s445 + $0x4] sm:$0xf]
    %v448 = vld [vmem:[%s445 + $0x8] sm:$0xf]
    %v449 = vld [vmem:[%s445 + $0xc] sm:$0xf]
    %v450 = vld [vmem:[%s445 + $0x10] sm:$0xf]
    %v451 = vld [vmem:[%s445 + $0x14] sm:$0xf]
    %v452 = vld [vmem:[%s445 + $0x18] sm:$0xf]
    %v453 = vld [vmem:[%s445 + $0x1c] sm:$0xf]
    %v454 = vld [vmem:[%s445 + $0x20] sm:$0xf]
    %v455 = vld [vmem:[%s445 + $0x24] sm:$0xf]
    %v456 = vld [vmem:[%s445 + $0x28] sm:$0xf]
    %v457 = vld [vmem:[%s445 + $0x2c] sm:$0xf]
    %v458 = vld [vmem:[%s445 + $0x30] sm:$0xf]
    %v459 = vld [vmem:[%s445 + $0x34] sm:$0xf]
    %v460 = vld [vmem:[%s445 + $0x38] sm:$0xf]
    %v461 = vld [vmem:[%s445 + $0x3c] sm:$0xf]
    %v462 = vld [vmem:[%s445 + $0x40] sm:$0xf]
    %v463 = vld [vmem:[%s445 + $0x44] sm:$0xf]
    %v464 = vld [vmem:[%s445 + $0x48] sm:$0xf]
    %v465 = vld [vmem:[%s445 + $0x4c] sm:$0xf]
    %v466 = vld [vmem:[%s445 + $0x50] sm:$0xf]
    %v467 = vld [vmem:[%s445 + $0x54] sm:$0xf]
    %v468 = vld [vmem:[%s445 + $0x58] sm:$0xf]
    %v469 = vld [vmem:[%s445 + $0x5c] sm:$0xf]
    %v470 = vld [vmem:[%s445 + $0x60] sm:$0xf]
    %v471 = vld [vmem:[%s445 + $0x64] sm:$0xf]
    %v472 = vld [vmem:[%s445 + $0x68] sm:$0xf]
    %v473 = vld [vmem:[%s445 + $0x6c] sm:$0xf]
    %v474 = vld [vmem:[%s445 + $0x70] sm:$0xf]
    %v475 = vld [vmem:[%s445 + $0x74] sm:$0xf]
    %v476 = vld [vmem:[%s445 + $0x78] sm:$0xf]
    %v477 = vld [vmem:[%s445 + $0x7c] sm:$0xf]
    %v478 = vld [vmem:[%s445 + $0x80] sm:$0xf]
    %v479 = vld [vmem:[%s445 + $0x84] sm:$0xf]
    %v480 = vld [vmem:[%s445 + $0x88] sm:$0xf]
    %v481 = vld [vmem:[%s445 + $0x8c] sm:$0xf]
    %v482 = vld [vmem:[%s445 + $0x90] sm:$0xf]
    %v483 = vld [vmem:[%s445 + $0x94] sm:$0xf]
    %v484 = vld [vmem:[%s445 + $0x98] sm:$0xf]
    %v485 = vld [vmem:[%s445 + $0x9c] sm:$0xf]
    %v486 = vld [vmem:[%s445 + $0xa0] sm:$0xf]
    %v487 = vld [vmem:[%s445 + $0xa4] sm:$0xf]
    %v488 = vld [vmem:[%s445 + $0xa8] sm:$0xf]
    %v489 = vld [vmem:[%s445 + $0xac] sm:$0xf]
    %v490 = vld [vmem:[%s445 + $0xb0] sm:$0xf]
    %v491 = vld [vmem:[%s445 + $0xb4] sm:$0xf]
    %v492 = vld [vmem:[%s445 + $0xb8] sm:$0xf]
    %v493 = vld [vmem:[%s445 + $0xbc] sm:$0xf]
    %v542 = vunpack.c.l.b16 %v446
    %v543 = vunpack.c.l.b16 %v447
    %v544 = vunpack.c.l.b16 %v448
    %v545 = vunpack.c.l.b16 %v449
    %v546 = vunpack.c.l.b16 %v450
    %v547 = vunpack.c.l.b16 %v451
    %v548 = vunpack.c.l.b16 %v452
    %v549 = vunpack.c.l.b16 %v453
    %v550 = vunpack.c.l.b16 %v454
    %v551 = vunpack.c.l.b16 %v455
    %v552 = vunpack.c.l.b16 %v456
    %v553 = vunpack.c.l.b16 %v457
    %v554 = vunpack.c.l.b16 %v458
    %v555 = vunpack.c.l.b16 %v459
    %v556 = vunpack.c.l.b16 %v460
    %v557 = vunpack.c.l.b16 %v461
    %v558 = vunpack.c.l.b16 %v462
    %v559 = vunpack.c.l.b16 %v463
    %v560 = vunpack.c.l.b16 %v464
    %v561 = vunpack.c.l.b16 %v465
    %v562 = vunpack.c.l.b16 %v466
    %v563 = vunpack.c.l.b16 %v467
    %v564 = vunpack.c.l.b16 %v468
    %v565 = vunpack.c.l.b16 %v469
    %v566 = vunpack.c.l.b16 %v470
    %v567 = vunpack.c.l.b16 %v471
    %v568 = vunpack.c.l.b16 %v472
    %v569 = vunpack.c.l.b16 %v473
    %v570 = vunpack.c.l.b16 %v474
    %v571 = vunpack.c.l.b16 %v475
    %v572 = vunpack.c.l.b16 %v476
    %v573 = vunpack.c.l.b16 %v477
    %v574 = vunpack.c.l.b16 %v478
    %v575 = vunpack.c.l.b16 %v479
    %v576 = vunpack.c.l.b16 %v480
    %v577 = vunpack.c.l.b16 %v481
    %v578 = vunpack.c.l.b16 %v482
    %v579 = vunpack.c.l.b16 %v483
    %v580 = vunpack.c.l.b16 %v484
    %v581 = vunpack.c.l.b16 %v485
    %v582 = vunpack.c.l.b16 %v486
    %v583 = vunpack.c.l.b16 %v487
    %v584 = vunpack.c.l.b16 %v488
    %v585 = vunpack.c.l.b16 %v489
    %v586 = vunpack.c.l.b16 %v490
    %v587 = vunpack.c.l.b16 %v491
    %v588 = vunpack.c.l.b16 %v492
    %v589 = vunpack.c.l.b16 %v493
    %v590 = vpack.c.b16 %v543, %v542
    %v591 = vpack.c.b16 %v545, %v544
    %v592 = vpack.c.b16 %v547, %v546
    %v593 = vpack.c.b16 %v549, %v548
    %v594 = vpack.c.b16 %v551, %v550
    %v595 = vpack.c.b16 %v553, %v552
    %v596 = vpack.c.b16 %v555, %v554
    %v597 = vpack.c.b16 %v557, %v556
    %v598 = vpack.c.b16 %v559, %v558
    %v599 = vpack.c.b16 %v561, %v560
    %v600 = vpack.c.b16 %v563, %v562
    %v601 = vpack.c.b16 %v565, %v564
    %v602 = vpack.c.b16 %v567, %v566
    %v603 = vpack.c.b16 %v569, %v568
    %v604 = vpack.c.b16 %v571, %v570
    %v605 = vpack.c.b16 %v573, %v572
    %v606 = vpack.c.b16 %v575, %v574
    %v607 = vpack.c.b16 %v577, %v576
    %v608 = vpack.c.b16 %v579, %v578
    %v609 = vpack.c.b16 %v581, %v580
    %v610 = vpack.c.b16 %v583, %v582
    %v611 = vpack.c.b16 %v585, %v584
    %v612 = vpack.c.b16 %v587, %v586
    %v613 = vpack.c.b16 %v589, %v588
    %638 = vmatprep.subr.bf16.mxu0 0
    %639 = vmatpush1.bf16.msra.mxu0 %v590
    %640 = vmatprep.subr.bf16.mxu0 0
    %641 = vmatpush1.bf16.msra.mxu0 %v591
    %642 = vmatprep.subr.bf16.mxu0 0
    %643 = vmatpush1.bf16.msra.mxu0 %v592
    %644 = vmatprep.subr.bf16.mxu0 0
    %645 = vmatpush1.bf16.msra.mxu0 %v593
    %646 = vmatprep.subr.bf16.mxu0 0
    %647 = vmatpush1.bf16.msra.mxu0 %v594
    %648 = vmatprep.subr.bf16.mxu0 0
    %649 = vmatpush1.bf16.msra.mxu0 %v595
    %650 = vmatprep.subr.bf16.mxu0 0
    %651 = vmatpush1.bf16.msra.mxu0 %v596
    %652 = vmatprep.subr.bf16.mxu0 0
    %653 = vmatpush1.bf16.msra.mxu0 %v597
    %654 = vmatprep.subr.bf16.mxu0 0
    %655 = vmatpush1.bf16.msra.mxu0 %v598
    %656 = vmatprep.subr.bf16.mxu0 0
    %657 = vmatpush1.bf16.msra.mxu0 %v599
    %658 = vmatprep.subr.bf16.mxu0 0
    %659 = vmatpush1.bf16.msra.mxu0 %v600
    %660 = vmatprep.subr.bf16.mxu0 0
    %661 = vmatpush1.bf16.msra.mxu0 %v601
    %662 = vmatprep.subr.bf16.mxu0 0
    %663 = vmatpush1.bf16.msra.mxu0 %v602
    %664 = vmatprep.subr.bf16.mxu0 0
    %665 = vmatpush1.bf16.msra.mxu0 %v603
    %666 = vmatprep.subr.bf16.mxu0 0
    %667 = vmatpush1.bf16.msra.mxu0 %v604
    %668 = vmatprep.subr.bf16.mxu0 0
    %669 = vmatpush1.bf16.msra.mxu0 %v605
    %670 = vmatprep.mubr.bf16.mxu0 %v128
    %671 = vmatmul.mubr.bf16.gmra.mrb[0].mxu0 %v127
    %v672 = vpop.f32.mrb[0].mxu0
    %v673 = vadd.f32 0.0, %v672
    %v674 = vpop.f32.mrb[0].mxu0
    %v675 = vpop.f32.mrb[0].mxu0
    %v676 = vadd.f32 0.0, %v675
    %v677 = vpop.f32.mrb[0].mxu0
    %678 = vmatprep.mubr.bf16.mxu0 %v131
    %679 = vmatmul.mubr.bf16.gmra.mrb[0].mxu0 %v130
    %v680 = vpop.f32.mrb[0].mxu0
    %v681 = vadd.f32 0.0, %v680
    %v682 = vpop.f32.mrb[0].mxu0
    %v683 = vpop.f32.mrb[0].mxu0
    %v684 = vadd.f32 0.0, %v683
    %v685 = vpop.f32.mrb[0].mxu0
    %686 = vdwg.mxu0
    %687 = vmatprep.subr.bf16.mxu0 0
    %688 = vmatpush1.bf16.msra.mxu0 %v606
    %689 = vmatprep.subr.bf16.mxu0 0
    %690 = vmatpush1.bf16.msra.mxu0 %v607
    %691 = vmatprep.subr.bf16.mxu0 0
    %692 = vmatpush1.bf16.msra.mxu0 %v608
    %693 = vmatprep.subr.bf16.mxu0 0
    %694 = vmatpush1.bf16.msra.mxu0 %v609
    %695 = vmatprep.subr.bf16.mxu0 0
    %696 = vmatpush1.bf16.msra.mxu0 %v610
    %697 = vmatprep.subr.bf16.mxu0 0
    %698 = vmatpush1.bf16.msra.mxu0 %v611
    %699 = vmatprep.subr.bf16.mxu0 0
    %700 = vmatpush1.bf16.msra.mxu0 %v612
    %701 = vmatprep.subr.bf16.mxu0 0
    %702 = vmatpush1.bf16.msra.mxu0 %v613
    %703 = vmatprep.subr.bf16.mxu0 0
    %704 = vmatpush1.bf16.msra.mxu0 0
    %705 = vmatprep.subr.bf16.mxu0 0
    %706 = vmatpush1.bf16.msra.mxu0 0
    %707 = vmatprep.subr.bf16.mxu0 0
    %708 = vmatpush1.bf16.msra.mxu0 0
    %709 = vmatprep.subr.bf16.mxu0 0
    %710 = vmatpush1.bf16.msra.mxu0 0
    %711 = vmatprep.subr.bf16.mxu0 0
    %712 = vmatpush1.bf16.msra.mxu0 0
    %713 = vmatprep.subr.bf16.mxu0 0
    %714 = vmatpush1.bf16.msra.mxu0 0
    %715 = vmatprep.subr.bf16.mxu0 0
    %716 = vmatpush1.bf16.msra.mxu0 0
    %717 = vmatprep.subr.bf16.mxu0 0
    %718 = vmatpush1.bf16.msra.mxu0 0
    %719 = vmatprep.mubr.bf16.mxu0 0
    %720 = vmatmul.mubr.bf16.gmra.mrb[0].mxu0 %v129
    %v721 = vpop.f32.mrb[0].mxu0
    %v722 = vadd.f32 %v673, %v721
    %v723 = vpop.f32.mrb[0].mxu0
    %v724 = vpop.f32.mrb[0].mxu0
    %v725 = vadd.f32 %v676, %v724
    %v726 = vpop.f32.mrb[0].mxu0
    %727 = vmatprep.mubr.bf16.mxu0 0
    %728 = vmatmul.mubr.bf16.gmra.mrb[0].mxu0 %v132
    %v729 = vpop.f32.mrb[0].mxu0
    %v730 = vadd.f32 %v681, %v729
    %v731 = vpop.f32.mrb[0].mxu0
    %v732 = vpop.f32.mrb[0].mxu0
    %v733 = vadd.f32 %v684, %v732
    %v734 = vpop.f32.mrb[0].mxu0
    %735 = vdwg.mxu0
    %v736 = vld [vmem:[%s2 + $0x1] sm:$0x1]
    %v737 = vld [vmem:[%s3 + $0x1] sm:$0x1]
    %v738 = vlaneseq
    %v739 = vshrl.u32 %v738, 7
    %v740 = vsub.s32 0, %v739
    %v741 = vrot.slane %v736, %v740
    %v742 = vmul.f32 %v722, %v741
    %v743 = vmul.f32 %v725, %v741
    %v744 = vmul.f32 %v730, %v741
    %v745 = vmul.f32 %v733, %v741
    %v746 = vlaneseq
    %v747 = vshrl.u32 %v746, 7
    %v748 = vsub.s32 0, %v747
    %v749 = vrot.slane %v737, %v748
    %v750 = vadd.f32 %v742, %v749
    %v751 = vadd.f32 %v743, %v749
    %v752 = vadd.f32 %v744, %v749
    %v753 = vadd.f32 %v745, %v749
    %v754 = vmax.f32 %v750, 0.0
    %v755 = vmax.f32 %v751, 0.0
    %v756 = vmax.f32 %v752, 0.0
    %v757 = vmax.f32 %v753, 0.0
    %s758 = scalar_lea.vmem [#allocation2], 576
    %v759 = vld [vmem:[%s758] sm:$0xf]
    %v760 = vld [vmem:[%s758 + $0x4] sm:$0xf]
    %v761 = vld [vmem:[%s758 + $0x8] sm:$0xf]
    %v762 = vld [vmem:[%s758 + $0xc] sm:$0xf]
    %v763 = vld [vmem:[%s758 + $0x10] sm:$0xf]
    %v764 = vld [vmem:[%s758 + $0x14] sm:$0xf]
    %v765 = vld [vmem:[%s758 + $0x18] sm:$0xf]
    %v766 = vld [vmem:[%s758 + $0x1c] sm:$0xf]
    %v767 = vld [vmem:[%s758 + $0x20] sm:$0xf]
    %v768 = vld [vmem:[%s758 + $0x24] sm:$0xf]
    %v769 = vld [vmem:[%s758 + $0x28] sm:$0xf]
    %v770 = vld [vmem:[%s758 + $0x2c] sm:$0xf]
    %v771 = vld [vmem:[%s758 + $0x30] sm:$0xf]
    %v772 = vld [vmem:[%s758 + $0x34] sm:$0xf]
    %v773 = vld [vmem:[%s758 + $0x38] sm:$0xf]
    %v774 = vld [vmem:[%s758 + $0x3c] sm:$0xf]
    %v775 = vld [vmem:[%s758 + $0x40] sm:$0xf]
    %v776 = vld [vmem:[%s758 + $0x44] sm:$0xf]
    %v777 = vld [vmem:[%s758 + $0x48] sm:$0xf]
    %v778 = vld [vmem:[%s758 + $0x4c] sm:$0xf]
    %v779 = vld [vmem:[%s758 + $0x50] sm:$0xf]
    %v780 = vld [vmem:[%s758 + $0x54] sm:$0xf]
    %v781 = vld [vmem:[%s758 + $0x58] sm:$0xf]
    %v782 = vld [vmem:[%s758 + $0x5c] sm:$0xf]
    %v783 = vld [vmem:[%s758 + $0x60] sm:$0xf]
    %v784 = vld [vmem:[%s758 + $0x64] sm:$0xf]
    %v785 = vld [vmem:[%s758 + $0x68] sm:$0xf]
    %v786 = vld [vmem:[%s758 + $0x6c] sm:$0xf]
    %v787 = vld [vmem:[%s758 + $0x70] sm:$0xf]
    %v788 = vld [vmem:[%s758 + $0x74] sm:$0xf]
    %v789 = vld [vmem:[%s758 + $0x78] sm:$0xf]
    %v790 = vld [vmem:[%s758 + $0x7c] sm:$0xf]
    %v791 = vld [vmem:[%s758 + $0x80] sm:$0xf]
    %v792 = vld [vmem:[%s758 + $0x84] sm:$0xf]
    %v793 = vld [vmem:[%s758 + $0x88] sm:$0xf]
    %v794 = vld [vmem:[%s758 + $0x8c] sm:$0xf]
    %v795 = vld [vmem:[%s758 + $0x90] sm:$0xf]
    %v796 = vld [vmem:[%s758 + $0x94] sm:$0xf]
    %v797 = vld [vmem:[%s758 + $0x98] sm:$0xf]
    %v798 = vld [vmem:[%s758 + $0x9c] sm:$0xf]
    %v799 = vld [vmem:[%s758 + $0xa0] sm:$0xf]
    %v800 = vld [vmem:[%s758 + $0xa4] sm:$0xf]
    %v801 = vld [vmem:[%s758 + $0xa8] sm:$0xf]
    %v802 = vld [vmem:[%s758 + $0xac] sm:$0xf]
    %v803 = vld [vmem:[%s758 + $0xb0] sm:$0xf]
    %v804 = vld [vmem:[%s758 + $0xb4] sm:$0xf]
    %v805 = vld [vmem:[%s758 + $0xb8] sm:$0xf]
    %v806 = vld [vmem:[%s758 + $0xbc] sm:$0xf]
    %v855 = vunpack.c.l.b16 %v759
    %v856 = vunpack.c.l.b16 %v760
    %v857 = vunpack.c.l.b16 %v761
    %v858 = vunpack.c.l.b16 %v762
    %v859 = vunpack.c.l.b16 %v763
    %v860 = vunpack.c.l.b16 %v764
    %v861 = vunpack.c.l.b16 %v765
    %v862 = vunpack.c.l.b16 %v766
    %v863 = vunpack.c.l.b16 %v767
    %v864 = vunpack.c.l.b16 %v768
    %v865 = vunpack.c.l.b16 %v769
    %v866 = vunpack.c.l.b16 %v770
    %v867 = vunpack.c.l.b16 %v771
    %v868 = vunpack.c.l.b16 %v772
    %v869 = vunpack.c.l.b16 %v773
    %v870 = vunpack.c.l.b16 %v774
    %v871 = vunpack.c.l.b16 %v775
    %v872 = vunpack.c.l.b16 %v776
    %v873 = vunpack.c.l.b16 %v777
    %v874 = vunpack.c.l.b16 %v778
    %v875 = vunpack.c.l.b16 %v779
    %v876 = vunpack.c.l.b16 %v780
    %v877 = vunpack.c.l.b16 %v781
    %v878 = vunpack.c.l.b16 %v782
    %v879 = vunpack.c.l.b16 %v783
    %v880 = vunpack.c.l.b16 %v784
    %v881 = vunpack.c.l.b16 %v785
    %v882 = vunpack.c.l.b16 %v786
    %v883 = vunpack.c.l.b16 %v787
    %v884 = vunpack.c.l.b16 %v788
    %v885 = vunpack.c.l.b16 %v789
    %v886 = vunpack.c.l.b16 %v790
    %v887 = vunpack.c.l.b16 %v791
    %v888 = vunpack.c.l.b16 %v792
    %v889 = vunpack.c.l.b16 %v793
    %v890 = vunpack.c.l.b16 %v794
    %v891 = vunpack.c.l.b16 %v795
    %v892 = vunpack.c.l.b16 %v796
    %v893 = vunpack.c.l.b16 %v797
    %v894 = vunpack.c.l.b16 %v798
    %v895 = vunpack.c.l.b16 %v799
    %v896 = vunpack.c.l.b16 %v800
    %v897 = vunpack.c.l.b16 %v801
    %v898 = vunpack.c.l.b16 %v802
    %v899 = vunpack.c.l.b16 %v803
    %v900 = vunpack.c.l.b16 %v804
    %v901 = vunpack.c.l.b16 %v805
    %v902 = vunpack.c.l.b16 %v806
    %v903 = vpack.c.b16 %v856, %v855
    %v904 = vpack.c.b16 %v858, %v857
    %v905 = vpack.c.b16 %v860, %v859
    %v906 = vpack.c.b16 %v862, %v861
    %v907 = vpack.c.b16 %v864, %v863
    %v908 = vpack.c.b16 %v866, %v865
    %v909 = vpack.c.b16 %v868, %v867
    %v910 = vpack.c.b16 %v870, %v869
    %v911 = vpack.c.b16 %v872, %v871
    %v912 = vpack.c.b16 %v874, %v873
    %v913 = vpack.c.b16 %v876, %v875
    %v914 = vpack.c.b16 %v878, %v877
    %v915 = vpack.c.b16 %v880, %v879
    %v916 = vpack.c.b16 %v882, %v881
    %v917 = vpack.c.b16 %v884, %v883
    %v918 = vpack.c.b16 %v886, %v885
    %v919 = vpack.c.b16 %v888, %v887
    %v920 = vpack.c.b16 %v890, %v889
    %v921 = vpack.c.b16 %v892, %v891
    %v922 = vpack.c.b16 %v894, %v893
    %v923 = vpack.c.b16 %v896, %v895
    %v924 = vpack.c.b16 %v898, %v897
    %v925 = vpack.c.b16 %v900, %v899
    %v926 = vpack.c.b16 %v902, %v901
    %951 = vmatprep.subr.bf16.mxu0 0
    %952 = vmatpush1.bf16.msra.mxu0 %v903
    %953 = vmatprep.subr.bf16.mxu0 0
    %954 = vmatpush1.bf16.msra.mxu0 %v904
    %955 = vmatprep.subr.bf16.mxu0 0
    %956 = vmatpush1.bf16.msra.mxu0 %v905
    %957 = vmatprep.subr.bf16.mxu0 0
    %958 = vmatpush1.bf16.msra.mxu0 %v906
    %959 = vmatprep.subr.bf16.mxu0 0
    %960 = vmatpush1.bf16.msra.mxu0 %v907
    %961 = vmatprep.subr.bf16.mxu0 0
    %962 = vmatpush1.bf16.msra.mxu0 %v908
    %963 = vmatprep.subr.bf16.mxu0 0
    %964 = vmatpush1.bf16.msra.mxu0 %v909
    %965 = vmatprep.subr.bf16.mxu0 0
    %966 = vmatpush1.bf16.msra.mxu0 %v910
    %967 = vmatprep.subr.bf16.mxu0 0
    %968 = vmatpush1.bf16.msra.mxu0 %v911
    %969 = vmatprep.subr.bf16.mxu0 0
    %970 = vmatpush1.bf16.msra.mxu0 %v912
    %971 = vmatprep.subr.bf16.mxu0 0
    %972 = vmatpush1.bf16.msra.mxu0 %v913
    %973 = vmatprep.subr.bf16.mxu0 0
    %974 = vmatpush1.bf16.msra.mxu0 %v914
    %975 = vmatprep.subr.bf16.mxu0 0
    %976 = vmatpush1.bf16.msra.mxu0 %v915
    %977 = vmatprep.subr.bf16.mxu0 0
    %978 = vmatpush1.bf16.msra.mxu0 %v916
    %979 = vmatprep.subr.bf16.mxu0 0
    %980 = vmatpush1.bf16.msra.mxu0 %v917
    %981 = vmatprep.subr.bf16.mxu0 0
    %982 = vmatpush1.bf16.msra.mxu0 %v918
    %983 = vmatprep.mubr.bf16.mxu0 %v128
    %984 = vmatmul.mubr.bf16.gmra.mrb[0].mxu0 %v127
    %v985 = vpop.f32.mrb[0].mxu0
    %v986 = vadd.f32 0.0, %v985
    %v987 = vpop.f32.mrb[0].mxu0
    %v988 = vpop.f32.mrb[0].mxu0
    %v989 = vadd.f32 0.0, %v988
    %v990 = vpop.f32.mrb[0].mxu0
    %991 = vmatprep.mubr.bf16.mxu0 %v131
    %992 = vmatmul.mubr.bf16.gmra.mrb[0].mxu0 %v130
    %v993 = vpop.f32.mrb[0].mxu0
    %v994 = vadd.f32 0.0, %v993
    %v995 = vpop.f32.mrb[0].mxu0
    %v996 = vpop.f32.mrb[0].mxu0
    %v997 = vadd.f32 0.0, %v996
    %v998 = vpop.f32.mrb[0].mxu0
    %999 = vdwg.mxu0
    %1000 = vmatprep.subr.bf16.mxu0 0
    %1001 = vmatpush1.bf16.msra.mxu0 %v919
    %1002 = vmatprep.subr.bf16.mxu0 0
    %1003 = vmatpush1.bf16.msra.mxu0 %v920
    %1004 = vmatprep.subr.bf16.mxu0 0
    %1005 = vmatpush1.bf16.msra.mxu0 %v921
    %1006 = vmatprep.subr.bf16.mxu0 0
    %1007 = vmatpush1.bf16.msra.mxu0 %v922
    %1008 = vmatprep.subr.bf16.mxu0 0
    %1009 = vmatpush1.bf16.msra.mxu0 %v923
    %1010 = vmatprep.subr.bf16.mxu0 0
    %1011 = vmatpush1.bf16.msra.mxu0 %v924
    %1012 = vmatprep.subr.bf16.mxu0 0
    %1013 = vmatpush1.bf16.msra.mxu0 %v925
    %1014 = vmatprep.subr.bf16.mxu0 0
    %1015 = vmatpush1.bf16.msra.mxu0 %v926
    %1016 = vmatprep.subr.bf16.mxu0 0
    %1017 = vmatpush1.bf16.msra.mxu0 0
    %1018 = vmatprep.subr.bf16.mxu0 0
    %1019 = vmatpush1.bf16.msra.mxu0 0
    %1020 = vmatprep.subr.bf16.mxu0 0
    %1021 = vmatpush1.bf16.msra.mxu0 0
    %1022 = vmatprep.subr.bf16.mxu0 0
    %1023 = vmatpush1.bf16.msra.mxu0 0
    %1024 = vmatprep.subr.bf16.mxu0 0
    %1025 = vmatpush1.bf16.msra.mxu0 0
    %1026 = vmatprep.subr.bf16.mxu0 0
    %1027 = vmatpush1.bf16.msra.mxu0 0
    %1028 = vmatprep.subr.bf16.mxu0 0
    %1029 = vmatpush1.bf16.msra.mxu0 0
    %1030 = vmatprep.subr.bf16.mxu0 0
    %1031 = vmatpush1.bf16.msra.mxu0 0
    %1032 = vmatprep.mubr.bf16.mxu0 0
    %1033 = vmatmul.mubr.bf16.gmra.mrb[0].mxu0 %v129
    %v1034 = vpop.f32.mrb[0].mxu0
    %v1035 = vadd.f32 %v986, %v1034
    %v1036 = vpop.f32.mrb[0].mxu0
    %v1037 = vpop.f32.mrb[0].mxu0
    %v1038 = vadd.f32 %v989, %v1037
    %v1039 = vpop.f32.mrb[0].mxu0
    %1040 = vmatprep.mubr.bf16.mxu0 0
    %1041 = vmatmul.mubr.bf16.gmra.mrb[0].mxu0 %v132
    %v1042 = vpop.f32.mrb[0].mxu0
    %v1043 = vadd.f32 %v994, %v1042
    %v1044 = vpop.f32.mrb[0].mxu0
    %v1045 = vpop.f32.mrb[0].mxu0
    %v1046 = vadd.f32 %v997, %v1045
    %v1047 = vpop.f32.mrb[0].mxu0
    %1048 = vdwg.mxu0
    %v1049 = vld [vmem:[%s2 + $0x3] sm:$0x1]
    %v1050 = vld [vmem:[%s3 + $0x3] sm:$0x1]
    %v1051 = vlaneseq
    %v1052 = vshrl.u32 %v1051, 7
    %v1053 = vsub.s32 0, %v1052
    %v1054 = vrot.slane %v1049, %v1053
    %v1055 = vmul.f32 %v1035, %v1054
    %v1056 = vmul.f32 %v1038, %v1054
    %v1057 = vmul.f32 %v1043, %v1054
    %v1058 = vmul.f32 %v1046, %v1054
    %v1059 = vlaneseq
    %v1060 = vshrl.u32 %v1059, 7
    %v1061 = vsub.s32 0, %v1060
    %v1062 = vrot.slane %v1050, %v1061
    %v1063 = vadd.f32 %v1055, %v1062
    %v1064 = vadd.f32 %v1056, %v1062
    %v1065 = vadd.f32 %v1057, %v1062
    %v1066 = vadd.f32 %v1058, %v1062
    %v1067 = vmax.f32 %v1063, 0.0
    %v1068 = vmax.f32 %v1064, 0.0
    %v1069 = vmax.f32 %v1065, 0.0
    %v1070 = vmax.f32 %v1066, 0.0
    %v1071 = vrot.slane %v1067, 7
    %v1072 = vrot.slane %v1068, 7
    %v1073 = vrot.slane %v1069, 7
    %v1074 = vrot.slane %v1070, 7
    %v1075 = vsel %vm105, %v1073, %v1074
    %v1076 = vsel %vm105, %v1072, %v1073
    %v1077 = vsel %vm105, %v1071, %v1072
    %v1078 = vsel %vm105, %v1074, %v1071
    %v1079 = vsel %vm85, %v1078, 0.0
    %v1080 = vsel %vm86, %v1077, 0.0
    %v1081 = vsel %vm87, %v1076, 0.0
    %v1082 = vsel %vm88, %v1075, 0.0
    %v1083 = vrot.slane %v1067, 1
    %v1084 = vrot.slane %v1068, 1
    %v1085 = vrot.slane %v1069, 1
    %v1086 = vrot.slane %v1070, 1
    %v1087 = vsel %vm118, %v1085, %v1086
    %v1088 = vsel %vm118, %v1084, %v1085
    %v1089 = vsel %vm118, %v1083, %v1084
    %v1090 = vsel %vm118, %v1086, %v1083
    %v1091 = vsel %vm89, %v1089, 0.0
    %v1092 = vsel %vm90, %v1088, 0.0
    %v1093 = vsel %vm91, %v1087, 0.0
    %v1094 = vsel %vm92, %v1090, 0.0
    %v1095 = vpack.c.bf16 %v1080, %v1079
    %v1096 = vpack.c.bf16 %v1068, %v1067
    %v1097 = vpack.c.bf16 %v1092, %v1091
    %v1098 = vpack.c.bf16 %v1082, %v1081
    %v1099 = vpack.c.bf16 %v1070, %v1069
    %v1100 = vpack.c.bf16 %v1094, %v1093
    %s1101 = scalar_lea.vmem [#allocation2], 768
    %v1102 = vld [vmem:[%s1101] sm:$0xf]
    %v1103 = vld [vmem:[%s1101 + $0x4] sm:$0xf]
    %v1104 = vld [vmem:[%s1101 + $0x8] sm:$0xf]
    %v1105 = vld [vmem:[%s1101 + $0xc] sm:$0xf]
    %v1106 = vld [vmem:[%s1101 + $0x10] sm:$0xf]
    %v1107 = vld [vmem:[%s1101 + $0x14] sm:$0xf]
    %v1108 = vld [vmem:[%s1101 + $0x18] sm:$0xf]
    %v1109 = vld [vmem:[%s1101 + $0x1c] sm:$0xf]
    %v1110 = vld [vmem:[%s1101 + $0x20] sm:$0xf]
    %v1111 = vld [vmem:[%s1101 + $0x24] sm:$0xf]
    %v1112 = vld [vmem:[%s1101 + $0x28] sm:$0xf]
    %v1113 = vld [vmem:[%s1101 + $0x2c] sm:$0xf]
    %v1114 = vld [vmem:[%s1101 + $0x30] sm:$0xf]
    %v1115 = vld [vmem:[%s1101 + $0x34] sm:$0xf]
    %v1116 = vld [vmem:[%s1101 + $0x38] sm:$0xf]
    %v1117 = vld [vmem:[%s1101 + $0x3c] sm:$0xf]
    %v1118 = vld [vmem:[%s1101 + $0x40] sm:$0xf]
    %v1119 = vld [vmem:[%s1101 + $0x44] sm:$0xf]
    %v1120 = vld [vmem:[%s1101 + $0x48] sm:$0xf]
    %v1121 = vld [vmem:[%s1101 + $0x4c] sm:$0xf]
    %v1122 = vld [vmem:[%s1101 + $0x50] sm:$0xf]
    %v1123 = vld [vmem:[%s1101 + $0x54] sm:$0xf]
    %v1124 = vld [vmem:[%s1101 + $0x58] sm:$0xf]
    %v1125 = vld [vmem:[%s1101 + $0x5c] sm:$0xf]
    %v1126 = vld [vmem:[%s1101 + $0x60] sm:$0xf]
    %v1127 = vld [vmem:[%s1101 + $0x64] sm:$0xf]
    %v1128 = vld [vmem:[%s1101 + $0x68] sm:$0xf]
    %v1129 = vld [vmem:[%s1101 + $0x6c] sm:$0xf]
    %v1130 = vld [vmem:[%s1101 + $0x70] sm:$0xf]
    %v1131 = vld [vmem:[%s1101 + $0x74] sm:$0xf]
    %v1132 = vld [vmem:[%s1101 + $0x78] sm:$0xf]
    %v1133 = vld [vmem:[%s1101 + $0x7c] sm:$0xf]
    %v1134 = vld [vmem:[%s1101 + $0x80] sm:$0xf]
    %v1135 = vld [vmem:[%s1101 + $0x84] sm:$0xf]
    %v1136 = vld [vmem:[%s1101 + $0x88] sm:$0xf]
    %v1137 = vld [vmem:[%s1101 + $0x8c] sm:$0xf]
    %v1138 = vld [vmem:[%s1101 + $0x90] sm:$0xf]
    %v1139 = vld [vmem:[%s1101 + $0x94] sm:$0xf]
    %v1140 = vld [vmem:[%s1101 + $0x98] sm:$0xf]
    %v1141 = vld [vmem:[%s1101 + $0x9c] sm:$0xf]
    %v1142 = vld [vmem:[%s1101 + $0xa0] sm:$0xf]
    %v1143 = vld [vmem:[%s1101 + $0xa4] sm:$0xf]
    %v1144 = vld [vmem:[%s1101 + $0xa8] sm:$0xf]
    %v1145 = vld [vmem:[%s1101 + $0xac] sm:$0xf]
    %v1146 = vld [vmem:[%s1101 + $0xb0] sm:$0xf]
    %v1147 = vld [vmem:[%s1101 + $0xb4] sm:$0xf]
    %v1148 = vld [vmem:[%s1101 + $0xb8] sm:$0xf]
    %v1149 = vld [vmem:[%s1101 + $0xbc] sm:$0xf]
    %v1198 = vunpack.c.l.b16 %v1102
    %v1199 = vunpack.c.l.b16 %v1103
    %v1200 = vunpack.c.l.b16 %v1104
    %v1201 = vunpack.c.l.b16 %v1105
    %v1202 = vunpack.c.l.b16 %v1106
    %v1203 = vunpack.c.l.b16 %v1107
    %v1204 = vunpack.c.l.b16 %v1108
    %v1205 = vunpack.c.l.b16 %v1109
    %v1206 = vunpack.c.l.b16 %v1110
    %v1207 = vunpack.c.l.b16 %v1111
    %v1208 = vunpack.c.l.b16 %v1112
    %v1209 = vunpack.c.l.b16 %v1113
    %v1210 = vunpack.c.l.b16 %v1114
    %v1211 = vunpack.c.l.b16 %v1115
    %v1212 = vunpack.c.l.b16 %v1116
    %v1213 = vunpack.c.l.b16 %v1117
    %v1214 = vunpack.c.l.b16 %v1118
    %v1215 = vunpack.c.l.b16 %v1119
    %v1216 = vunpack.c.l.b16 %v1120
    %v1217 = vunpack.c.l.b16 %v1121
    %v1218 = vunpack.c.l.b16 %v1122
    %v1219 = vunpack.c.l.b16 %v1123
    %v1220 = vunpack.c.l.b16 %v1124
    %v1221 = vunpack.c.l.b16 %v1125
    %v1222 = vunpack.c.l.b16 %v1126
    %v1223 = vunpack.c.l.b16 %v1127
    %v1224 = vunpack.c.l.b16 %v1128
    %v1225 = vunpack.c.l.b16 %v1129
    %v1226 = vunpack.c.l.b16 %v1130
    %v1227 = vunpack.c.l.b16 %v1131
    %v1228 = vunpack.c.l.b16 %v1132
    %v1229 = vunpack.c.l.b16 %v1133
    %v1230 = vunpack.c.l.b16 %v1134
    %v1231 = vunpack.c.l.b16 %v1135
    %v1232 = vunpack.c.l.b16 %v1136
    %v1233 = vunpack.c.l.b16 %v1137
    %v1234 = vunpack.c.l.b16 %v1138
    %v1235 = vunpack.c.l.b16 %v1139
    %v1236 = vunpack.c.l.b16 %v1140
    %v1237 = vunpack.c.l.b16 %v1141
    %v1238 = vunpack.c.l.b16 %v1142
    %v1239 = vunpack.c.l.b16 %v1143
    %v1240 = vunpack.c.l.b16 %v1144
    %v1241 = vunpack.c.l.b16 %v1145
    %v1242 = vunpack.c.l.b16 %v1146
    %v1243 = vunpack.c.l.b16 %v1147
    %v1244 = vunpack.c.l.b16 %v1148
    %v1245 = vunpack.c.l.b16 %v1149
    %v1246 = vpack.c.b16 %v1199, %v1198
    %v1247 = vpack.c.b16 %v1201, %v1200
    %v1248 = vpack.c.b16 %v1203, %v1202
    %v1249 = vpack.c.b16 %v1205, %v1204
    %v1250 = vpack.c.b16 %v1207, %v1206
    %v1251 = vpack.c.b16 %v1209, %v1208
    %v1252 = vpack.c.b16 %v1211, %v1210
    %v1253 = vpack.c.b16 %v1213, %v1212
    %v1254 = vpack.c.b16 %v1215, %v1214
    %v1255 = vpack.c.b16 %v1217, %v1216
    %v1256 = vpack.c.b16 %v1219, %v1218
    %v1257 = vpack.c.b16 %v1221, %v1220
    %v1258 = vpack.c.b16 %v1223, %v1222
    %v1259 = vpack.c.b16 %v1225, %v1224
    %v1260 = vpack.c.b16 %v1227, %v1226
    %v1261 = vpack.c.b16 %v1229, %v1228
    %v1262 = vpack.c.b16 %v1231, %v1230
    %v1263 = vpack.c.b16 %v1233, %v1232
    %v1264 = vpack.c.b16 %v1235, %v1234
    %v1265 = vpack.c.b16 %v1237, %v1236
    %v1266 = vpack.c.b16 %v1239, %v1238
    %v1267 = vpack.c.b16 %v1241, %v1240
    %v1268 = vpack.c.b16 %v1243, %v1242
    %v1269 = vpack.c.b16 %v1245, %v1244
    %1294 = vmatprep.subr.bf16.mxu0 0
    %1295 = vmatpush1.bf16.msra.mxu0 %v1246
    %1296 = vmatprep.subr.bf16.mxu0 0
    %1297 = vmatpush1.bf16.msra.mxu0 %v1247
    %1298 = vmatprep.subr.bf16.mxu0 0
    %1299 = vmatpush1.bf16.msra.mxu0 %v1248
    %1300 = vmatprep.subr.bf16.mxu0 0
    %1301 = vmatpush1.bf16.msra.mxu0 %v1249
    %1302 = vmatprep.subr.bf16.mxu0 0
    %1303 = vmatpush1.bf16.msra.mxu0 %v1250
    %1304 = vmatprep.subr.bf16.mxu0 0
    %1305 = vmatpush1.bf16.msra.mxu0 %v1251
    %1306 = vmatprep.subr.bf16.mxu0 0
    %1307 = vmatpush1.bf16.msra.mxu0 %v1252
    %1308 = vmatprep.subr.bf16.mxu0 0
    %1309 = vmatpush1.bf16.msra.mxu0 %v1253
    %1310 = vmatprep.subr.bf16.mxu0 0
    %1311 = vmatpush1.bf16.msra.mxu0 %v1254
    %1312 = vmatprep.subr.bf16.mxu0 0
    %1313 = vmatpush1.bf16.msra.mxu0 %v1255
    %1314 = vmatprep.subr.bf16.mxu0 0
    %1315 = vmatpush1.bf16.msra.mxu0 %v1256
    %1316 = vmatprep.subr.bf16.mxu0 0
    %1317 = vmatpush1.bf16.msra.mxu0 %v1257
    %1318 = vmatprep.subr.bf16.mxu0 0
    %1319 = vmatpush1.bf16.msra.mxu0 %v1258
    %1320 = vmatprep.subr.bf16.mxu0 0
    %1321 = vmatpush1.bf16.msra.mxu0 %v1259
    %1322 = vmatprep.subr.bf16.mxu0 0
    %1323 = vmatpush1.bf16.msra.mxu0 %v1260
    %1324 = vmatprep.subr.bf16.mxu0 0
    %1325 = vmatpush1.bf16.msra.mxu0 %v1261
    %1326 = vmatprep.mubr.bf16.mxu0 %v1096
    %1327 = vmatmul.mubr.bf16.gmra.mrb[0].mxu0 %v1095
    %v1328 = vpop.f32.mrb[0].mxu0
    %v1329 = vadd.f32 0.0, %v1328
    %v1330 = vpop.f32.mrb[0].mxu0
    %v1331 = vpop.f32.mrb[0].mxu0
    %v1332 = vadd.f32 0.0, %v1331
    %v1333 = vpop.f32.mrb[0].mxu0
    %1334 = vmatprep.mubr.bf16.mxu0 %v1099
    %1335 = vmatmul.mubr.bf16.gmra.mrb[0].mxu0 %v1098
    %v1336 = vpop.f32.mrb[0].mxu0
    %v1337 = vadd.f32 0.0, %v1336
    %v1338 = vpop.f32.mrb[0].mxu0
    %v1339 = vpop.f32.mrb[0].mxu0
    %v1340 = vadd.f32 0.0, %v1339
    %v1341 = vpop.f32.mrb[0].mxu0
    %1342 = vdwg.mxu0
    %1343 = vmatprep.subr.bf16.mxu0 0
    %1344 = vmatpush1.bf16.msra.mxu0 %v1262
    %1345 = vmatprep.subr.bf16.mxu0 0
    %1346 = vmatpush1.bf16.msra.mxu0 %v1263
    %1347 = vmatprep.subr.bf16.mxu0 0
    %1348 = vmatpush1.bf16.msra.mxu0 %v1264
    %1349 = vmatprep.subr.bf16.mxu0 0
    %1350 = vmatpush1.bf16.msra.mxu0 %v1265
    %1351 = vmatprep.subr.bf16.mxu0 0
    %1352 = vmatpush1.bf16.msra.mxu0 %v1266
    %1353 = vmatprep.subr.bf16.mxu0 0
    %1354 = vmatpush1.bf16.msra.mxu0 %v1267
    %1355 = vmatprep.subr.bf16.mxu0 0
    %1356 = vmatpush1.bf16.msra.mxu0 %v1268
    %1357 = vmatprep.subr.bf16.mxu0 0
    %1358 = vmatpush1.bf16.msra.mxu0 %v1269
    %1359 = vmatprep.subr.bf16.mxu0 0
    %1360 = vmatpush1.bf16.msra.mxu0 0
    %1361 = vmatprep.subr.bf16.mxu0 0
    %1362 = vmatpush1.bf16.msra.mxu0 0
    %1363 = vmatprep.subr.bf16.mxu0 0
    %1364 = vmatpush1.bf16.msra.mxu0 0
    %1365 = vmatprep.subr.bf16.mxu0 0
    %1366 = vmatpush1.bf16.msra.mxu0 0
    %1367 = vmatprep.subr.bf16.mxu0 0
    %1368 = vmatpush1.bf16.msra.mxu0 0
    %1369 = vmatprep.subr.bf16.mxu0 0
    %1370 = vmatpush1.bf16.msra.mxu0 0
    %1371 = vmatprep.subr.bf16.mxu0 0
    %1372 = vmatpush1.bf16.msra.mxu0 0
    %1373 = vmatprep.subr.bf16.mxu0 0
    %1374 = vmatpush1.bf16.msra.mxu0 0
    %1375 = vmatprep.mubr.bf16.mxu0 0
    %1376 = vmatmul.mubr.bf16.gmra.mrb[0].mxu0 %v1097
    %v1377 = vpop.f32.mrb[0].mxu0
    %v1378 = vadd.f32 %v1329, %v1377
    %v1379 = vpop.f32.mrb[0].mxu0
    %v1380 = vpop.f32.mrb[0].mxu0
    %v1381 = vadd.f32 %v1332, %v1380
    %v1382 = vpop.f32.mrb[0].mxu0
    %1383 = vmatprep.mubr.bf16.mxu0 0
    %1384 = vmatmul.mubr.bf16.gmra.mrb[0].mxu0 %v1100
    %v1385 = vpop.f32.mrb[0].mxu0
    %v1386 = vadd.f32 %v1337, %v1385
    %v1387 = vpop.f32.mrb[0].mxu0
    %v1388 = vpop.f32.mrb[0].mxu0
    %v1389 = vadd.f32 %v1340, %v1388
    %v1390 = vpop.f32.mrb[0].mxu0
    %1391 = vdwg.mxu0
    %v1392 = vld [vmem:[%s2 + $0x4] sm:$0x1]
    %v1393 = vld [vmem:[%s3 + $0x4] sm:$0x1]
    %v1394 = vlaneseq
    %v1395 = vshrl.u32 %v1394, 7
    %v1396 = vsub.s32 0, %v1395
    %v1397 = vrot.slane %v1392, %v1396
    %v1398 = vmul.f32 %v1378, %v1397
    %v1399 = vmul.f32 %v1381, %v1397
    %v1400 = vmul.f32 %v1386, %v1397
    %v1401 = vmul.f32 %v1389, %v1397
    %v1402 = vlaneseq
    %v1403 = vshrl.u32 %v1402, 7
    %v1404 = vsub.s32 0, %v1403
    %v1405 = vrot.slane %v1393, %v1404
    %v1406 = vadd.f32 %v1398, %v1405
    %v1407 = vadd.f32 %v1399, %v1405
    %v1408 = vadd.f32 %v1400, %v1405
    %v1409 = vadd.f32 %v1401, %v1405
    %v1410 = vmax.f32 %v1406, 0.0
    %v1411 = vmax.f32 %v1407, 0.0
    %v1412 = vmax.f32 %v1408, 0.0
    %v1413 = vmax.f32 %v1409, 0.0
    %v1414 = vadd.f32 %v754, %v1410
    %v1415 = vadd.f32 %v755, %v1411
    %v1416 = vadd.f32 %v756, %v1412
    %v1417 = vadd.f32 %v757, %v1413
    %v1418 = vmul.f32 %v1414, 0.5
    %v1419 = vmul.f32 %v1415, 0.5
    %v1420 = vmul.f32 %v1416, 0.5
    %v1421 = vmul.f32 %v1417, 0.5
    %v1422 = vrot.slane %v1418, 7
    %v1423 = vrot.slane %v1419, 7
    %v1424 = vrot.slane %v1420, 7
    %v1425 = vrot.slane %v1421, 7
    %v1426 = vsel %vm105, %v1424, %v1425
    %v1427 = vsel %vm105, %v1423, %v1424
    %v1428 = vsel %vm105, %v1422, %v1423
    %v1429 = vsel %vm105, %v1425, %v1422
    %v1430 = vsel %vm85, %v1429, 0.0
    %v1431 = vsel %vm86, %v1428, 0.0
    %v1432 = vsel %vm87, %v1427, 0.0
    %v1433 = vsel %vm88, %v1426, 0.0
    %v1434 = vrot.slane %v1418, 1
    %v1435 = vrot.slane %v1419, 1
    %v1436 = vrot.slane %v1420, 1
    %v1437 = vrot.slane %v1421, 1
    %v1438 = vsel %vm118, %v1436, %v1437
    %v1439 = vsel %vm118, %v1435, %v1436
    %v1440 = vsel %vm118, %v1434, %v1435
    %v1441 = vsel %vm118, %v1437, %v1434
    %v1442 = vsel %vm89, %v1440, 0.0
    %v1443 = vsel %vm90, %v1439, 0.0
    %v1444 = vsel %vm91, %v1438, 0.0
    %v1445 = vsel %vm92, %v1441, 0.0
    %v1446 = vpack.c.bf16 %v1431, %v1430
    %v1447 = vpack.c.bf16 %v1419, %v1418
    %v1448 = vpack.c.bf16 %v1443, %v1442
    %v1449 = vpack.c.bf16 %v1433, %v1432
    %v1450 = vpack.c.bf16 %v1421, %v1420
    %v1451 = vpack.c.bf16 %v1445, %v1444
    %s1452 = scalar_lea.vmem [#allocation2], 384
    %v1453 = vld [vmem:[%s1452] sm:$0xf]
    %v1454 = vld [vmem:[%s1452 + $0x4] sm:$0xf]
    %v1455 = vld [vmem:[%s1452 + $0x8] sm:$0xf]
    %v1456 = vld [vmem:[%s1452 + $0xc] sm:$0xf]
    %v1457 = vld [vmem:[%s1452 + $0x10] sm:$0xf]
    %v1458 = vld [vmem:[%s1452 + $0x14] sm:$0xf]
    %v1459 = vld [vmem:[%s1452 + $0x18] sm:$0xf]
    %v1460 = vld [vmem:[%s1452 + $0x1c] sm:$0xf]
    %v1461 = vld [vmem:[%s1452 + $0x20] sm:$0xf]
    %v1462 = vld [vmem:[%s1452 + $0x24] sm:$0xf]
    %v1463 = vld [vmem:[%s1452 + $0x28] sm:$0xf]
    %v1464 = vld [vmem:[%s1452 + $0x2c] sm:$0xf]
    %v1465 = vld [vmem:[%s1452 + $0x30] sm:$0xf]
    %v1466 = vld [vmem:[%s1452 + $0x34] sm:$0xf]
    %v1467 = vld [vmem:[%s1452 + $0x38] sm:$0xf]
    %v1468 = vld [vmem:[%s1452 + $0x3c] sm:$0xf]
    %v1469 = vld [vmem:[%s1452 + $0x40] sm:$0xf]
    %v1470 = vld [vmem:[%s1452 + $0x44] sm:$0xf]
    %v1471 = vld [vmem:[%s1452 + $0x48] sm:$0xf]
    %v1472 = vld [vmem:[%s1452 + $0x4c] sm:$0xf]
    %v1473 = vld [vmem:[%s1452 + $0x50] sm:$0xf]
    %v1474 = vld [vmem:[%s1452 + $0x54] sm:$0xf]
    %v1475 = vld [vmem:[%s1452 + $0x58] sm:$0xf]
    %v1476 = vld [vmem:[%s1452 + $0x5c] sm:$0xf]
    %v1477 = vld [vmem:[%s1452 + $0x60] sm:$0xf]
    %v1478 = vld [vmem:[%s1452 + $0x64] sm:$0xf]
    %v1479 = vld [vmem:[%s1452 + $0x68] sm:$0xf]
    %v1480 = vld [vmem:[%s1452 + $0x6c] sm:$0xf]
    %v1481 = vld [vmem:[%s1452 + $0x70] sm:$0xf]
    %v1482 = vld [vmem:[%s1452 + $0x74] sm:$0xf]
    %v1483 = vld [vmem:[%s1452 + $0x78] sm:$0xf]
    %v1484 = vld [vmem:[%s1452 + $0x7c] sm:$0xf]
    %v1485 = vld [vmem:[%s1452 + $0x80] sm:$0xf]
    %v1486 = vld [vmem:[%s1452 + $0x84] sm:$0xf]
    %v1487 = vld [vmem:[%s1452 + $0x88] sm:$0xf]
    %v1488 = vld [vmem:[%s1452 + $0x8c] sm:$0xf]
    %v1489 = vld [vmem:[%s1452 + $0x90] sm:$0xf]
    %v1490 = vld [vmem:[%s1452 + $0x94] sm:$0xf]
    %v1491 = vld [vmem:[%s1452 + $0x98] sm:$0xf]
    %v1492 = vld [vmem:[%s1452 + $0x9c] sm:$0xf]
    %v1493 = vld [vmem:[%s1452 + $0xa0] sm:$0xf]
    %v1494 = vld [vmem:[%s1452 + $0xa4] sm:$0xf]
    %v1495 = vld [vmem:[%s1452 + $0xa8] sm:$0xf]
    %v1496 = vld [vmem:[%s1452 + $0xac] sm:$0xf]
    %v1497 = vld [vmem:[%s1452 + $0xb0] sm:$0xf]
    %v1498 = vld [vmem:[%s1452 + $0xb4] sm:$0xf]
    %v1499 = vld [vmem:[%s1452 + $0xb8] sm:$0xf]
    %v1500 = vld [vmem:[%s1452 + $0xbc] sm:$0xf]
    %v1549 = vunpack.c.l.b16 %v1453
    %v1550 = vunpack.c.l.b16 %v1454
    %v1551 = vunpack.c.l.b16 %v1455
    %v1552 = vunpack.c.l.b16 %v1456
    %v1553 = vunpack.c.l.b16 %v1457
    %v1554 = vunpack.c.l.b16 %v1458
    %v1555 = vunpack.c.l.b16 %v1459
    %v1556 = vunpack.c.l.b16 %v1460
    %v1557 = vunpack.c.l.b16 %v1461
    %v1558 = vunpack.c.l.b16 %v1462
    %v1559 = vunpack.c.l.b16 %v1463
    %v1560 = vunpack.c.l.b16 %v1464
    %v1561 = vunpack.c.l.b16 %v1465
    %v1562 = vunpack.c.l.b16 %v1466
    %v1563 = vunpack.c.l.b16 %v1467
    %v1564 = vunpack.c.l.b16 %v1468
    %v1565 = vunpack.c.l.b16 %v1469
    %v1566 = vunpack.c.l.b16 %v1470
    %v1567 = vunpack.c.l.b16 %v1471
    %v1568 = vunpack.c.l.b16 %v1472
    %v1569 = vunpack.c.l.b16 %v1473
    %v1570 = vunpack.c.l.b16 %v1474
    %v1571 = vunpack.c.l.b16 %v1475
    %v1572 = vunpack.c.l.b16 %v1476
    %v1573 = vunpack.c.l.b16 %v1477
    %v1574 = vunpack.c.l.b16 %v1478
    %v1575 = vunpack.c.l.b16 %v1479
    %v1576 = vunpack.c.l.b16 %v1480
    %v1577 = vunpack.c.l.b16 %v1481
    %v1578 = vunpack.c.l.b16 %v1482
    %v1579 = vunpack.c.l.b16 %v1483
    %v1580 = vunpack.c.l.b16 %v1484
    %v1581 = vunpack.c.l.b16 %v1485
    %v1582 = vunpack.c.l.b16 %v1486
    %v1583 = vunpack.c.l.b16 %v1487
    %v1584 = vunpack.c.l.b16 %v1488
    %v1585 = vunpack.c.l.b16 %v1489
    %v1586 = vunpack.c.l.b16 %v1490
    %v1587 = vunpack.c.l.b16 %v1491
    %v1588 = vunpack.c.l.b16 %v1492
    %v1589 = vunpack.c.l.b16 %v1493
    %v1590 = vunpack.c.l.b16 %v1494
    %v1591 = vunpack.c.l.b16 %v1495
    %v1592 = vunpack.c.l.b16 %v1496
    %v1593 = vunpack.c.l.b16 %v1497
    %v1594 = vunpack.c.l.b16 %v1498
    %v1595 = vunpack.c.l.b16 %v1499
    %v1596 = vunpack.c.l.b16 %v1500
    %v1597 = vpack.c.b16 %v1550, %v1549
    %v1598 = vpack.c.b16 %v1552, %v1551
    %v1599 = vpack.c.b16 %v1554, %v1553
    %v1600 = vpack.c.b16 %v1556, %v1555
    %v1601 = vpack.c.b16 %v1558, %v1557
    %v1602 = vpack.c.b16 %v1560, %v1559
    %v1603 = vpack.c.b16 %v1562, %v1561
    %v1604 = vpack.c.b16 %v1564, %v1563
    %v1605 = vpack.c.b16 %v1566, %v1565
    %v1606 = vpack.c.b16 %v1568, %v1567
    %v1607 = vpack.c.b16 %v1570, %v1569
    %v1608 = vpack.c.b16 %v1572, %v1571
    %v1609 = vpack.c.b16 %v1574, %v1573
    %v1610 = vpack.c.b16 %v1576, %v1575
    %v1611 = vpack.c.b16 %v1578, %v1577
    %v1612 = vpack.c.b16 %v1580, %v1579
    %v1613 = vpack.c.b16 %v1582, %v1581
    %v1614 = vpack.c.b16 %v1584, %v1583
    %v1615 = vpack.c.b16 %v1586, %v1585
    %v1616 = vpack.c.b16 %v1588, %v1587
    %v1617 = vpack.c.b16 %v1590, %v1589
    %v1618 = vpack.c.b16 %v1592, %v1591
    %v1619 = vpack.c.b16 %v1594, %v1593
    %v1620 = vpack.c.b16 %v1596, %v1595
    %1645 = vmatprep.subr.bf16.mxu0 0
    %1646 = vmatpush1.bf16.msra.mxu0 %v1597
    %1647 = vmatprep.subr.bf16.mxu0 0
    %1648 = vmatpush1.bf16.msra.mxu0 %v1598
    %1649 = vmatprep.subr.bf16.mxu0 0
    %1650 = vmatpush1.bf16.msra.mxu0 %v1599
    %1651 = vmatprep.subr.bf16.mxu0 0
    %1652 = vmatpush1.bf16.msra.mxu0 %v1600
    %1653 = vmatprep.subr.bf16.mxu0 0
    %1654 = vmatpush1.bf16.msra.mxu0 %v1601
    %1655 = vmatprep.subr.bf16.mxu0 0
    %1656 = vmatpush1.bf16.msra.mxu0 %v1602
    %1657 = vmatprep.subr.bf16.mxu0 0
    %1658 = vmatpush1.bf16.msra.mxu0 %v1603
    %1659 = vmatprep.subr.bf16.mxu0 0
    %1660 = vmatpush1.bf16.msra.mxu0 %v1604
    %1661 = vmatprep.subr.bf16.mxu0 0
    %1662 = vmatpush1.bf16.msra.mxu0 %v1605
    %1663 = vmatprep.subr.bf16.mxu0 0
    %1664 = vmatpush1.bf16.msra.mxu0 %v1606
    %1665 = vmatprep.subr.bf16.mxu0 0
    %1666 = vmatpush1.bf16.msra.mxu0 %v1607
    %1667 = vmatprep.subr.bf16.mxu0 0
    %1668 = vmatpush1.bf16.msra.mxu0 %v1608
    %1669 = vmatprep.subr.bf16.mxu0 0
    %1670 = vmatpush1.bf16.msra.mxu0 %v1609
    %1671 = vmatprep.subr.bf16.mxu0 0
    %1672 = vmatpush1.bf16.msra.mxu0 %v1610
    %1673 = vmatprep.subr.bf16.mxu0 0
    %1674 = vmatpush1.bf16.msra.mxu0 %v1611
    %1675 = vmatprep.subr.bf16.mxu0 0
    %1676 = vmatpush1.bf16.msra.mxu0 %v1612
    %1677 = vmatprep.mubr.bf16.mxu0 %v1447
    %1678 = vmatmul.mubr.bf16.gmra.mrb[0].mxu0 %v1446
    %v1679 = vpop.f32.mrb[0].mxu0
    %v1680 = vadd.f32 0.0, %v1679
    %v1681 = vpop.f32.mrb[0].mxu0
    %v1682 = vpop.f32.mrb[0].mxu0
    %v1683 = vadd.f32 0.0, %v1682
    %v1684 = vpop.f32.mrb[0].mxu0
    %1685 = vmatprep.mubr.bf16.mxu0 %v1450
    %1686 = vmatmul.mubr.bf16.gmra.mrb[0].mxu0 %v1449
    %v1687 = vpop.f32.mrb[0].mxu0
    %v1688 = vadd.f32 0.0, %v1687
    %v1689 = vpop.f32.mrb[0].mxu0
    %v1690 = vpop.f32.mrb[0].mxu0
    %v1691 = vadd.f32 0.0, %v1690
    %v1692 = vpop.f32.mrb[0].mxu0
    %1693 = vdwg.mxu0
    %1694 = vmatprep.subr.bf16.mxu0 0
    %1695 = vmatpush1.bf16.msra.mxu0 %v1613
    %1696 = vmatprep.subr.bf16.mxu0 0
    %1697 = vmatpush1.bf16.msra.mxu0 %v1614
    %1698 = vmatprep.subr.bf16.mxu0 0
    %1699 = vmatpush1.bf16.msra.mxu0 %v1615
    %1700 = vmatprep.subr.bf16.mxu0 0
    %1701 = vmatpush1.bf16.msra.mxu0 %v1616
    %1702 = vmatprep.subr.bf16.mxu0 0
    %1703 = vmatpush1.bf16.msra.mxu0 %v1617
    %1704 = vmatprep.subr.bf16.mxu0 0
    %1705 = vmatpush1.bf16.msra.mxu0 %v1618
    %1706 = vmatprep.subr.bf16.mxu0 0
    %1707 = vmatpush1.bf16.msra.mxu0 %v1619
    %1708 = vmatprep.subr.bf16.mxu0 0
    %1709 = vmatpush1.bf16.msra.mxu0 %v1620
    %1710 = vmatprep.subr.bf16.mxu0 0
    %1711 = vmatpush1.bf16.msra.mxu0 0
    %1712 = vmatprep.subr.bf16.mxu0 0
    %1713 = vmatpush1.bf16.msra.mxu0 0
    %1714 = vmatprep.subr.bf16.mxu0 0
    %1715 = vmatpush1.bf16.msra.mxu0 0
    %1716 = vmatprep.subr.bf16.mxu0 0
    %1717 = vmatpush1.bf16.msra.mxu0 0
    %1718 = vmatprep.subr.bf16.mxu0 0
    %1719 = vmatpush1.bf16.msra.mxu0 0
    %1720 = vmatprep.subr.bf16.mxu0 0
    %1721 = vmatpush1.bf16.msra.mxu0 0
    %1722 = vmatprep.subr.bf16.mxu0 0
    %1723 = vmatpush1.bf16.msra.mxu0 0
    %1724 = vmatprep.subr.bf16.mxu0 0
    %1725 = vmatpush1.bf16.msra.mxu0 0
    %1726 = vmatprep.mubr.bf16.mxu0 0
    %1727 = vmatmul.mubr.bf16.gmra.mrb[0].mxu0 %v1448
    %v1728 = vpop.f32.mrb[0].mxu0
    %v1729 = vadd.f32 %v1680, %v1728
    %v1730 = vpop.f32.mrb[0].mxu0
    %v1731 = vpop.f32.mrb[0].mxu0
    %v1732 = vadd.f32 %v1683, %v1731
    %v1733 = vpop.f32.mrb[0].mxu0
    %1734 = vmatprep.mubr.bf16.mxu0 0
    %1735 = vmatmul.mubr.bf16.gmra.mrb[0].mxu0 %v1451
    %v1736 = vpop.f32.mrb[0].mxu0
    %v1737 = vadd.f32 %v1688, %v1736
    %v1738 = vpop.f32.mrb[0].mxu0
    %v1739 = vpop.f32.mrb[0].mxu0
    %v1740 = vadd.f32 %v1691, %v1739
    %v1741 = vpop.f32.mrb[0].mxu0
    %1742 = vdwg.mxu0
    %v1743 = vld [vmem:[%s2 + $0x2] sm:$0x1]
    %v1744 = vld [vmem:[%s3 + $0x2] sm:$0x1]
    %v1745 = vlaneseq
    %v1746 = vshrl.u32 %v1745, 7
    %v1747 = vsub.s32 0, %v1746
    %v1748 = vrot.slane %v1743, %v1747
    %v1749 = vmul.f32 %v1729, %v1748
    %v1750 = vmul.f32 %v1732, %v1748
    %v1751 = vmul.f32 %v1737, %v1748
    %v1752 = vmul.f32 %v1740, %v1748
    %v1753 = vlaneseq
    %v1754 = vshrl.u32 %v1753, 7
    %v1755 = vsub.s32 0, %v1754
    %v1756 = vrot.slane %v1744, %v1755
    %v1757 = vadd.f32 %v1749, %v1756
    %v1758 = vadd.f32 %v1750, %v1756
    %v1759 = vadd.f32 %v1751, %v1756
    %v1760 = vadd.f32 %v1752, %v1756
    %v1761 = vmax.f32 %v1757, 0.0
    %v1762 = vmax.f32 %v1758, 0.0
    %v1763 = vmax.f32 %v1759, 0.0
    %v1764 = vmax.f32 %v1760, 0.0
    %s1765 = scalar_lea.vmem [#allocation2], 960
    %v1766 = vld [vmem:[%s1765] sm:$0xf]
    %v1767 = vld [vmem:[%s1765 + $0x4] sm:$0xf]
    %v1768 = vld [vmem:[%s1765 + $0x8] sm:$0xf]
    %v1769 = vld [vmem:[%s1765 + $0xc] sm:$0xf]
    %v1770 = vld [vmem:[%s1765 + $0x10] sm:$0xf]
    %v1771 = vld [vmem:[%s1765 + $0x14] sm:$0xf]
    %v1772 = vld [vmem:[%s1765 + $0x18] sm:$0xf]
    %v1773 = vld [vmem:[%s1765 + $0x1c] sm:$0xf]
    %v1774 = vld [vmem:[%s1765 + $0x20] sm:$0xf]
    %v1775 = vld [vmem:[%s1765 + $0x24] sm:$0xf]
    %v1776 = vld [vmem:[%s1765 + $0x28] sm:$0xf]
    %v1777 = vld [vmem:[%s1765 + $0x2c] sm:$0xf]
    %v1778 = vld [vmem:[%s1765 + $0x30] sm:$0xf]
    %v1779 = vld [vmem:[%s1765 + $0x34] sm:$0xf]
    %v1780 = vld [vmem:[%s1765 + $0x38] sm:$0xf]
    %v1781 = vld [vmem:[%s1765 + $0x3c] sm:$0xf]
    %v1782 = vld [vmem:[%s1765 + $0x40] sm:$0xf]
    %v1783 = vld [vmem:[%s1765 + $0x44] sm:$0xf]
    %v1784 = vld [vmem:[%s1765 + $0x48] sm:$0xf]
    %v1785 = vld [vmem:[%s1765 + $0x4c] sm:$0xf]
    %v1786 = vld [vmem:[%s1765 + $0x50] sm:$0xf]
    %v1787 = vld [vmem:[%s1765 + $0x54] sm:$0xf]
    %v1788 = vld [vmem:[%s1765 + $0x58] sm:$0xf]
    %v1789 = vld [vmem:[%s1765 + $0x5c] sm:$0xf]
    %v1790 = vld [vmem:[%s1765 + $0x60] sm:$0xf]
    %v1791 = vld [vmem:[%s1765 + $0x64] sm:$0xf]
    %v1792 = vld [vmem:[%s1765 + $0x68] sm:$0xf]
    %v1793 = vld [vmem:[%s1765 + $0x6c] sm:$0xf]
    %v1794 = vld [vmem:[%s1765 + $0x70] sm:$0xf]
    %v1795 = vld [vmem:[%s1765 + $0x74] sm:$0xf]
    %v1796 = vld [vmem:[%s1765 + $0x78] sm:$0xf]
    %v1797 = vld [vmem:[%s1765 + $0x7c] sm:$0xf]
    %v1798 = vld [vmem:[%s1765 + $0x80] sm:$0xf]
    %v1799 = vld [vmem:[%s1765 + $0x84] sm:$0xf]
    %v1800 = vld [vmem:[%s1765 + $0x88] sm:$0xf]
    %v1801 = vld [vmem:[%s1765 + $0x8c] sm:$0xf]
    %v1802 = vld [vmem:[%s1765 + $0x90] sm:$0xf]
    %v1803 = vld [vmem:[%s1765 + $0x94] sm:$0xf]
    %v1804 = vld [vmem:[%s1765 + $0x98] sm:$0xf]
    %v1805 = vld [vmem:[%s1765 + $0x9c] sm:$0xf]
    %v1806 = vld [vmem:[%s1765 + $0xa0] sm:$0xf]
    %v1807 = vld [vmem:[%s1765 + $0xa4] sm:$0xf]
    %v1808 = vld [vmem:[%s1765 + $0xa8] sm:$0xf]
    %v1809 = vld [vmem:[%s1765 + $0xac] sm:$0xf]
    %v1810 = vld [vmem:[%s1765 + $0xb0] sm:$0xf]
    %v1811 = vld [vmem:[%s1765 + $0xb4] sm:$0xf]
    %v1812 = vld [vmem:[%s1765 + $0xb8] sm:$0xf]
    %v1813 = vld [vmem:[%s1765 + $0xbc] sm:$0xf]
    %v1862 = vunpack.c.l.b16 %v1766
    %v1863 = vunpack.c.l.b16 %v1767
    %v1864 = vunpack.c.l.b16 %v1768
    %v1865 = vunpack.c.l.b16 %v1769
    %v1866 = vunpack.c.l.b16 %v1770
    %v1867 = vunpack.c.l.b16 %v1771
    %v1868 = vunpack.c.l.b16 %v1772
    %v1869 = vunpack.c.l.b16 %v1773
    %v1870 = vunpack.c.l.b16 %v1774
    %v1871 = vunpack.c.l.b16 %v1775
    %v1872 = vunpack.c.l.b16 %v1776
    %v1873 = vunpack.c.l.b16 %v1777
    %v1874 = vunpack.c.l.b16 %v1778
    %v1875 = vunpack.c.l.b16 %v1779
    %v1876 = vunpack.c.l.b16 %v1780
    %v1877 = vunpack.c.l.b16 %v1781
    %v1878 = vunpack.c.l.b16 %v1782
    %v1879 = vunpack.c.l.b16 %v1783
    %v1880 = vunpack.c.l.b16 %v1784
    %v1881 = vunpack.c.l.b16 %v1785
    %v1882 = vunpack.c.l.b16 %v1786
    %v1883 = vunpack.c.l.b16 %v1787
    %v1884 = vunpack.c.l.b16 %v1788
    %v1885 = vunpack.c.l.b16 %v1789
    %v1886 = vunpack.c.l.b16 %v1790
    %v1887 = vunpack.c.l.b16 %v1791
    %v1888 = vunpack.c.l.b16 %v1792
    %v1889 = vunpack.c.l.b16 %v1793
    %v1890 = vunpack.c.l.b16 %v1794
    %v1891 = vunpack.c.l.b16 %v1795
    %v1892 = vunpack.c.l.b16 %v1796
    %v1893 = vunpack.c.l.b16 %v1797
    %v1894 = vunpack.c.l.b16 %v1798
    %v1895 = vunpack.c.l.b16 %v1799
    %v1896 = vunpack.c.l.b16 %v1800
    %v1897 = vunpack.c.l.b16 %v1801
    %v1898 = vunpack.c.l.b16 %v1802
    %v1899 = vunpack.c.l.b16 %v1803
    %v1900 = vunpack.c.l.b16 %v1804
    %v1901 = vunpack.c.l.b16 %v1805
    %v1902 = vunpack.c.l.b16 %v1806
    %v1903 = vunpack.c.l.b16 %v1807
    %v1904 = vunpack.c.l.b16 %v1808
    %v1905 = vunpack.c.l.b16 %v1809
    %v1906 = vunpack.c.l.b16 %v1810
    %v1907 = vunpack.c.l.b16 %v1811
    %v1908 = vunpack.c.l.b16 %v1812
    %v1909 = vunpack.c.l.b16 %v1813
    %v1910 = vpack.c.b16 %v1863, %v1862
    %v1911 = vpack.c.b16 %v1865, %v1864
    %v1912 = vpack.c.b16 %v1867, %v1866
    %v1913 = vpack.c.b16 %v1869, %v1868
    %v1914 = vpack.c.b16 %v1871, %v1870
    %v1915 = vpack.c.b16 %v1873, %v1872
    %v1916 = vpack.c.b16 %v1875, %v1874
    %v1917 = vpack.c.b16 %v1877, %v1876
    %v1918 = vpack.c.b16 %v1879, %v1878
    %v1919 = vpack.c.b16 %v1881, %v1880
    %v1920 = vpack.c.b16 %v1883, %v1882
    %v1921 = vpack.c.b16 %v1885, %v1884
    %v1922 = vpack.c.b16 %v1887, %v1886
    %v1923 = vpack.c.b16 %v1889, %v1888
    %v1924 = vpack.c.b16 %v1891, %v1890
    %v1925 = vpack.c.b16 %v1893, %v1892
    %v1926 = vpack.c.b16 %v1895, %v1894
    %v1927 = vpack.c.b16 %v1897, %v1896
    %v1928 = vpack.c.b16 %v1899, %v1898
    %v1929 = vpack.c.b16 %v1901, %v1900
    %v1930 = vpack.c.b16 %v1903, %v1902
    %v1931 = vpack.c.b16 %v1905, %v1904
    %v1932 = vpack.c.b16 %v1907, %v1906
    %v1933 = vpack.c.b16 %v1909, %v1908
    %1958 = vmatprep.subr.bf16.mxu0 0
    %1959 = vmatpush1.bf16.msra.mxu0 %v1910
    %1960 = vmatprep.subr.bf16.mxu0 0
    %1961 = vmatpush1.bf16.msra.mxu0 %v1911
    %1962 = vmatprep.subr.bf16.mxu0 0
    %1963 = vmatpush1.bf16.msra.mxu0 %v1912
    %1964 = vmatprep.subr.bf16.mxu0 0
    %1965 = vmatpush1.bf16.msra.mxu0 %v1913
    %1966 = vmatprep.subr.bf16.mxu0 0
    %1967 = vmatpush1.bf16.msra.mxu0 %v1914
    %1968 = vmatprep.subr.bf16.mxu0 0
    %1969 = vmatpush1.bf16.msra.mxu0 %v1915
    %1970 = vmatprep.subr.bf16.mxu0 0
    %1971 = vmatpush1.bf16.msra.mxu0 %v1916
    %1972 = vmatprep.subr.bf16.mxu0 0
    %1973 = vmatpush1.bf16.msra.mxu0 %v1917
    %1974 = vmatprep.subr.bf16.mxu0 0
    %1975 = vmatpush1.bf16.msra.mxu0 %v1918
    %1976 = vmatprep.subr.bf16.mxu0 0
    %1977 = vmatpush1.bf16.msra.mxu0 %v1919
    %1978 = vmatprep.subr.bf16.mxu0 0
    %1979 = vmatpush1.bf16.msra.mxu0 %v1920
    %1980 = vmatprep.subr.bf16.mxu0 0
    %1981 = vmatpush1.bf16.msra.mxu0 %v1921
    %1982 = vmatprep.subr.bf16.mxu0 0
    %1983 = vmatpush1.bf16.msra.mxu0 %v1922
    %1984 = vmatprep.subr.bf16.mxu0 0
    %1985 = vmatpush1.bf16.msra.mxu0 %v1923
    %1986 = vmatprep.subr.bf16.mxu0 0
    %1987 = vmatpush1.bf16.msra.mxu0 %v1924
    %1988 = vmatprep.subr.bf16.mxu0 0
    %1989 = vmatpush1.bf16.msra.mxu0 %v1925
    %1990 = vmatprep.mubr.bf16.mxu0 %v1447
    %1991 = vmatmul.mubr.bf16.gmra.mrb[0].mxu0 %v1446
    %v1992 = vpop.f32.mrb[0].mxu0
    %v1993 = vadd.f32 0.0, %v1992
    %v1994 = vpop.f32.mrb[0].mxu0
    %v1995 = vpop.f32.mrb[0].mxu0
    %v1996 = vadd.f32 0.0, %v1995
    %v1997 = vpop.f32.mrb[0].mxu0
    %1998 = vmatprep.mubr.bf16.mxu0 %v1450
    %1999 = vmatmul.mubr.bf16.gmra.mrb[0].mxu0 %v1449
    %v2000 = vpop.f32.mrb[0].mxu0
    %v2001 = vadd.f32 0.0, %v2000
    %v2002 = vpop.f32.mrb[0].mxu0
    %v2003 = vpop.f32.mrb[0].mxu0
    %v2004 = vadd.f32 0.0, %v2003
    %v2005 = vpop.f32.mrb[0].mxu0
    %2006 = vdwg.mxu0
    %2007 = vmatprep.subr.bf16.mxu0 0
    %2008 = vmatpush1.bf16.msra.mxu0 %v1926
    %2009 = vmatprep.subr.bf16.mxu0 0
    %2010 = vmatpush1.bf16.msra.mxu0 %v1927
    %2011 = vmatprep.subr.bf16.mxu0 0
    %2012 = vmatpush1.bf16.msra.mxu0 %v1928
    %2013 = vmatprep.subr.bf16.mxu0 0
    %2014 = vmatpush1.bf16.msra.mxu0 %v1929
    %2015 = vmatprep.subr.bf16.mxu0 0
    %2016 = vmatpush1.bf16.msra.mxu0 %v1930
    %2017 = vmatprep.subr.bf16.mxu0 0
    %2018 = vmatpush1.bf16.msra.mxu0 %v1931
    %2019 = vmatprep.subr.bf16.mxu0 0
    %2020 = vmatpush1.bf16.msra.mxu0 %v1932
    %2021 = vmatprep.subr.bf16.mxu0 0
    %2022 = vmatpush1.bf16.msra.mxu0 %v1933
    %2023 = vmatprep.subr.bf16.mxu0 0
    %2024 = vmatpush1.bf16.msra.mxu0 0
    %2025 = vmatprep.subr.bf16.mxu0 0
    %2026 = vmatpush1.bf16.msra.mxu0 0
    %2027 = vmatprep.subr.bf16.mxu0 0
    %2028 = vmatpush1.bf16.msra.mxu0 0
    %2029 = vmatprep.subr.bf16.mxu0 0
    %2030 = vmatpush1.bf16.msra.mxu0 0
    %2031 = vmatprep.subr.bf16.mxu0 0
    %2032 = vmatpush1.bf16.msra.mxu0 0
    %2033 = vmatprep.subr.bf16.mxu0 0
    %2034 = vmatpush1.bf16.msra.mxu0 0
    %2035 = vmatprep.subr.bf16.mxu0 0
    %2036 = vmatpush1.bf16.msra.mxu0 0
    %2037 = vmatprep.subr.bf16.mxu0 0
    %2038 = vmatpush1.bf16.msra.mxu0 0
    %2039 = vmatprep.mubr.bf16.mxu0 0
    %2040 = vmatmul.mubr.bf16.gmra.mrb[0].mxu0 %v1448
    %v2041 = vpop.f32.mrb[0].mxu0
    %v2042 = vadd.f32 %v1993, %v2041
    %v2043 = vpop.f32.mrb[0].mxu0
    %v2044 = vpop.f32.mrb[0].mxu0
    %v2045 = vadd.f32 %v1996, %v2044
    %v2046 = vpop.f32.mrb[0].mxu0
    %2047 = vmatprep.mubr.bf16.mxu0 0
    %2048 = vmatmul.mubr.bf16.gmra.mrb[0].mxu0 %v1451
    %v2049 = vpop.f32.mrb[0].mxu0
    %v2050 = vadd.f32 %v2001, %v2049
    %v2051 = vpop.f32.mrb[0].mxu0
    %v2052 = vpop.f32.mrb[0].mxu0
    %v2053 = vadd.f32 %v2004, %v2052
    %v2054 = vpop.f32.mrb[0].mxu0
    %2055 = vdwg.mxu0
    %v2056 = vld [vmem:[%s2 + $0x5] sm:$0x1]
    %v2057 = vld [vmem:[%s3 + $0x5] sm:$0x1]
    %v2058 = vlaneseq
    %v2059 = vshrl.u32 %v2058, 7
    %v2060 = vsub.s32 0, %v2059
    %v2061 = vrot.slane %v2056, %v2060
    %v2062 = vmul.f32 %v2042, %v2061
    %v2063 = vmul.f32 %v2045, %v2061
    %v2064 = vmul.f32 %v2050, %v2061
    %v2065 = vmul.f32 %v2053, %v2061
    %v2066 = vlaneseq
    %v2067 = vshrl.u32 %v2066, 7
    %v2068 = vsub.s32 0, %v2067
    %v2069 = vrot.slane %v2057, %v2068
    %v2070 = vadd.f32 %v2062, %v2069
    %v2071 = vadd.f32 %v2063, %v2069
    %v2072 = vadd.f32 %v2064, %v2069
    %v2073 = vadd.f32 %v2065, %v2069
    %v2074 = vmax.f32 %v2070, 0.0
    %v2075 = vmax.f32 %v2071, 0.0
    %v2076 = vmax.f32 %v2072, 0.0
    %v2077 = vmax.f32 %v2073, 0.0
    %v2078 = vrot.slane %v2074, 7
    %v2079 = vrot.slane %v2075, 7
    %v2080 = vrot.slane %v2076, 7
    %v2081 = vrot.slane %v2077, 7
    %v2082 = vsel %vm105, %v2080, %v2081
    %v2083 = vsel %vm105, %v2079, %v2080
    %v2084 = vsel %vm105, %v2078, %v2079
    %v2085 = vsel %vm105, %v2081, %v2078
    %v2086 = vsel %vm85, %v2085, 0.0
    %v2087 = vsel %vm86, %v2084, 0.0
    %v2088 = vsel %vm87, %v2083, 0.0
    %v2089 = vsel %vm88, %v2082, 0.0
    %v2090 = vrot.slane %v2074, 1
    %v2091 = vrot.slane %v2075, 1
    %v2092 = vrot.slane %v2076, 1
    %v2093 = vrot.slane %v2077, 1
    %v2094 = vsel %vm118, %v2092, %v2093
    %v2095 = vsel %vm118, %v2091, %v2092
    %v2096 = vsel %vm118, %v2090, %v2091
    %v2097 = vsel %vm118, %v2093, %v2090
    %v2098 = vsel %vm89, %v2096, 0.0
    %v2099 = vsel %vm90, %v2095, 0.0
    %v2100 = vsel %vm91, %v2094, 0.0
    %v2101 = vsel %vm92, %v2097, 0.0
    %v2102 = vpack.c.bf16 %v2087, %v2086
    %v2103 = vpack.c.bf16 %v2075, %v2074
    %v2104 = vpack.c.bf16 %v2099, %v2098
    %v2105 = vpack.c.bf16 %v2089, %v2088
    %v2106 = vpack.c.bf16 %v2077, %v2076
    %v2107 = vpack.c.bf16 %v2101, %v2100
    %s2108 = scalar_lea.vmem [#allocation2], 1152
    %v2109 = vld [vmem:[%s2108] sm:$0xf]
    %v2110 = vld [vmem:[%s2108 + $0x4] sm:$0xf]
    %v2111 = vld [vmem:[%s2108 + $0x8] sm:$0xf]
    %v2112 = vld [vmem:[%s2108 + $0xc] sm:$0xf]
    %v2113 = vld [vmem:[%s2108 + $0x10] sm:$0xf]
    %v2114 = vld [vmem:[%s2108 + $0x14] sm:$0xf]
    %v2115 = vld [vmem:[%s2108 + $0x18] sm:$0xf]
    %v2116 = vld [vmem:[%s2108 + $0x1c] sm:$0xf]
    %v2117 = vld [vmem:[%s2108 + $0x20] sm:$0xf]
    %v2118 = vld [vmem:[%s2108 + $0x24] sm:$0xf]
    %v2119 = vld [vmem:[%s2108 + $0x28] sm:$0xf]
    %v2120 = vld [vmem:[%s2108 + $0x2c] sm:$0xf]
    %v2121 = vld [vmem:[%s2108 + $0x30] sm:$0xf]
    %v2122 = vld [vmem:[%s2108 + $0x34] sm:$0xf]
    %v2123 = vld [vmem:[%s2108 + $0x38] sm:$0xf]
    %v2124 = vld [vmem:[%s2108 + $0x3c] sm:$0xf]
    %v2125 = vld [vmem:[%s2108 + $0x40] sm:$0xf]
    %v2126 = vld [vmem:[%s2108 + $0x44] sm:$0xf]
    %v2127 = vld [vmem:[%s2108 + $0x48] sm:$0xf]
    %v2128 = vld [vmem:[%s2108 + $0x4c] sm:$0xf]
    %v2129 = vld [vmem:[%s2108 + $0x50] sm:$0xf]
    %v2130 = vld [vmem:[%s2108 + $0x54] sm:$0xf]
    %v2131 = vld [vmem:[%s2108 + $0x58] sm:$0xf]
    %v2132 = vld [vmem:[%s2108 + $0x5c] sm:$0xf]
    %v2133 = vld [vmem:[%s2108 + $0x60] sm:$0xf]
    %v2134 = vld [vmem:[%s2108 + $0x64] sm:$0xf]
    %v2135 = vld [vmem:[%s2108 + $0x68] sm:$0xf]
    %v2136 = vld [vmem:[%s2108 + $0x6c] sm:$0xf]
    %v2137 = vld [vmem:[%s2108 + $0x70] sm:$0xf]
    %v2138 = vld [vmem:[%s2108 + $0x74] sm:$0xf]
    %v2139 = vld [vmem:[%s2108 + $0x78] sm:$0xf]
    %v2140 = vld [vmem:[%s2108 + $0x7c] sm:$0xf]
    %v2141 = vld [vmem:[%s2108 + $0x80] sm:$0xf]
    %v2142 = vld [vmem:[%s2108 + $0x84] sm:$0xf]
    %v2143 = vld [vmem:[%s2108 + $0x88] sm:$0xf]
    %v2144 = vld [vmem:[%s2108 + $0x8c] sm:$0xf]
    %v2145 = vld [vmem:[%s2108 + $0x90] sm:$0xf]
    %v2146 = vld [vmem:[%s2108 + $0x94] sm:$0xf]
    %v2147 = vld [vmem:[%s2108 + $0x98] sm:$0xf]
    %v2148 = vld [vmem:[%s2108 + $0x9c] sm:$0xf]
    %v2149 = vld [vmem:[%s2108 + $0xa0] sm:$0xf]
    %v2150 = vld [vmem:[%s2108 + $0xa4] sm:$0xf]
    %v2151 = vld [vmem:[%s2108 + $0xa8] sm:$0xf]
    %v2152 = vld [vmem:[%s2108 + $0xac] sm:$0xf]
    %v2153 = vld [vmem:[%s2108 + $0xb0] sm:$0xf]
    %v2154 = vld [vmem:[%s2108 + $0xb4] sm:$0xf]
    %v2155 = vld [vmem:[%s2108 + $0xb8] sm:$0xf]
    %v2156 = vld [vmem:[%s2108 + $0xbc] sm:$0xf]
    %v2205 = vunpack.c.l.b16 %v2109
    %v2206 = vunpack.c.l.b16 %v2110
    %v2207 = vunpack.c.l.b16 %v2111
    %v2208 = vunpack.c.l.b16 %v2112
    %v2209 = vunpack.c.l.b16 %v2113
    %v2210 = vunpack.c.l.b16 %v2114
    %v2211 = vunpack.c.l.b16 %v2115
    %v2212 = vunpack.c.l.b16 %v2116
    %v2213 = vunpack.c.l.b16 %v2117
    %v2214 = vunpack.c.l.b16 %v2118
    %v2215 = vunpack.c.l.b16 %v2119
    %v2216 = vunpack.c.l.b16 %v2120
    %v2217 = vunpack.c.l.b16 %v2121
    %v2218 = vunpack.c.l.b16 %v2122
    %v2219 = vunpack.c.l.b16 %v2123
    %v2220 = vunpack.c.l.b16 %v2124
    %v2221 = vunpack.c.l.b16 %v2125
    %v2222 = vunpack.c.l.b16 %v2126
    %v2223 = vunpack.c.l.b16 %v2127
    %v2224 = vunpack.c.l.b16 %v2128
    %v2225 = vunpack.c.l.b16 %v2129
    %v2226 = vunpack.c.l.b16 %v2130
    %v2227 = vunpack.c.l.b16 %v2131
    %v2228 = vunpack.c.l.b16 %v2132
    %v2229 = vunpack.c.l.b16 %v2133
    %v2230 = vunpack.c.l.b16 %v2134
    %v2231 = vunpack.c.l.b16 %v2135
    %v2232 = vunpack.c.l.b16 %v2136
    %v2233 = vunpack.c.l.b16 %v2137
    %v2234 = vunpack.c.l.b16 %v2138
    %v2235 = vunpack.c.l.b16 %v2139
    %v2236 = vunpack.c.l.b16 %v2140
    %v2237 = vunpack.c.l.b16 %v2141
    %v2238 = vunpack.c.l.b16 %v2142
    %v2239 = vunpack.c.l.b16 %v2143
    %v2240 = vunpack.c.l.b16 %v2144
    %v2241 = vunpack.c.l.b16 %v2145
    %v2242 = vunpack.c.l.b16 %v2146
    %v2243 = vunpack.c.l.b16 %v2147
    %v2244 = vunpack.c.l.b16 %v2148
    %v2245 = vunpack.c.l.b16 %v2149
    %v2246 = vunpack.c.l.b16 %v2150
    %v2247 = vunpack.c.l.b16 %v2151
    %v2248 = vunpack.c.l.b16 %v2152
    %v2249 = vunpack.c.l.b16 %v2153
    %v2250 = vunpack.c.l.b16 %v2154
    %v2251 = vunpack.c.l.b16 %v2155
    %v2252 = vunpack.c.l.b16 %v2156
    %v2253 = vpack.c.b16 %v2206, %v2205
    %v2254 = vpack.c.b16 %v2208, %v2207
    %v2255 = vpack.c.b16 %v2210, %v2209
    %v2256 = vpack.c.b16 %v2212, %v2211
    %v2257 = vpack.c.b16 %v2214, %v2213
    %v2258 = vpack.c.b16 %v2216, %v2215
    %v2259 = vpack.c.b16 %v2218, %v2217
    %v2260 = vpack.c.b16 %v2220, %v2219
    %v2261 = vpack.c.b16 %v2222, %v2221
    %v2262 = vpack.c.b16 %v2224, %v2223
    %v2263 = vpack.c.b16 %v2226, %v2225
    %v2264 = vpack.c.b16 %v2228, %v2227
    %v2265 = vpack.c.b16 %v2230, %v2229
    %v2266 = vpack.c.b16 %v2232, %v2231
    %v2267 = vpack.c.b16 %v2234, %v2233
    %v2268 = vpack.c.b16 %v2236, %v2235
    %v2269 = vpack.c.b16 %v2238, %v2237
    %v2270 = vpack.c.b16 %v2240, %v2239
    %v2271 = vpack.c.b16 %v2242, %v2241
    %v2272 = vpack.c.b16 %v2244, %v2243
    %v2273 = vpack.c.b16 %v2246, %v2245
    %v2274 = vpack.c.b16 %v2248, %v2247
    %v2275 = vpack.c.b16 %v2250, %v2249
    %v2276 = vpack.c.b16 %v2252, %v2251
    %2301 = vmatprep.subr.bf16.mxu0 0
    %2302 = vmatpush1.bf16.msra.mxu0 %v2253
    %2303 = vmatprep.subr.bf16.mxu0 0
    %2304 = vmatpush1.bf16.msra.mxu0 %v2254
    %2305 = vmatprep.subr.bf16.mxu0 0
    %2306 = vmatpush1.bf16.msra.mxu0 %v2255
    %2307 = vmatprep.subr.bf16.mxu0 0
    %2308 = vmatpush1.bf16.msra.mxu0 %v2256
    %2309 = vmatprep.subr.bf16.mxu0 0
    %2310 = vmatpush1.bf16.msra.mxu0 %v2257
    %2311 = vmatprep.subr.bf16.mxu0 0
    %2312 = vmatpush1.bf16.msra.mxu0 %v2258
    %2313 = vmatprep.subr.bf16.mxu0 0
    %2314 = vmatpush1.bf16.msra.mxu0 %v2259
    %2315 = vmatprep.subr.bf16.mxu0 0
    %2316 = vmatpush1.bf16.msra.mxu0 %v2260
    %2317 = vmatprep.subr.bf16.mxu0 0
    %2318 = vmatpush1.bf16.msra.mxu0 %v2261
    %2319 = vmatprep.subr.bf16.mxu0 0
    %2320 = vmatpush1.bf16.msra.mxu0 %v2262
    %2321 = vmatprep.subr.bf16.mxu0 0
    %2322 = vmatpush1.bf16.msra.mxu0 %v2263
    %2323 = vmatprep.subr.bf16.mxu0 0
    %2324 = vmatpush1.bf16.msra.mxu0 %v2264
    %2325 = vmatprep.subr.bf16.mxu0 0
    %2326 = vmatpush1.bf16.msra.mxu0 %v2265
    %2327 = vmatprep.subr.bf16.mxu0 0
    %2328 = vmatpush1.bf16.msra.mxu0 %v2266
    %2329 = vmatprep.subr.bf16.mxu0 0
    %2330 = vmatpush1.bf16.msra.mxu0 %v2267
    %2331 = vmatprep.subr.bf16.mxu0 0
    %2332 = vmatpush1.bf16.msra.mxu0 %v2268
    %2333 = vmatprep.mubr.bf16.mxu0 %v2103
    %2334 = vmatmul.mubr.bf16.gmra.mrb[0].mxu0 %v2102
    %v2335 = vpop.f32.mrb[0].mxu0
    %v2336 = vadd.f32 0.0, %v2335
    %v2337 = vpop.f32.mrb[0].mxu0
    %v2338 = vpop.f32.mrb[0].mxu0
    %v2339 = vadd.f32 0.0, %v2338
    %v2340 = vpop.f32.mrb[0].mxu0
    %2341 = vmatprep.mubr.bf16.mxu0 %v2106
    %2342 = vmatmul.mubr.bf16.gmra.mrb[0].mxu0 %v2105
    %v2343 = vpop.f32.mrb[0].mxu0
    %v2344 = vadd.f32 0.0, %v2343
    %v2345 = vpop.f32.mrb[0].mxu0
    %v2346 = vpop.f32.mrb[0].mxu0
    %v2347 = vadd.f32 0.0, %v2346
    %v2348 = vpop.f32.mrb[0].mxu0
    %2349 = vdwg.mxu0
    %2350 = vmatprep.subr.bf16.mxu0 0
    %2351 = vmatpush1.bf16.msra.mxu0 %v2269
    %2352 = vmatprep.subr.bf16.mxu0 0
    %2353 = vmatpush1.bf16.msra.mxu0 %v2270
    %2354 = vmatprep.subr.bf16.mxu0 0
    %2355 = vmatpush1.bf16.msra.mxu0 %v2271
    %2356 = vmatprep.subr.bf16.mxu0 0
    %2357 = vmatpush1.bf16.msra.mxu0 %v2272
    %2358 = vmatprep.subr.bf16.mxu0 0
    %2359 = vmatpush1.bf16.msra.mxu0 %v2273
    %2360 = vmatprep.subr.bf16.mxu0 0
    %2361 = vmatpush1.bf16.msra.mxu0 %v2274
    %2362 = vmatprep.subr.bf16.mxu0 0
    %2363 = vmatpush1.bf16.msra.mxu0 %v2275
    %2364 = vmatprep.subr.bf16.mxu0 0
    %2365 = vmatpush1.bf16.msra.mxu0 %v2276
    %2366 = vmatprep.subr.bf16.mxu0 0
    %2367 = vmatpush1.bf16.msra.mxu0 0
    %2368 = vmatprep.subr.bf16.mxu0 0
    %2369 = vmatpush1.bf16.msra.mxu0 0
    %2370 = vmatprep.subr.bf16.mxu0 0
    %2371 = vmatpush1.bf16.msra.mxu0 0
    %2372 = vmatprep.subr.bf16.mxu0 0
    %2373 = vmatpush1.bf16.msra.mxu0 0
    %2374 = vmatprep.subr.bf16.mxu0 0
    %2375 = vmatpush1.bf16.msra.mxu0 0
    %2376 = vmatprep.subr.bf16.mxu0 0
    %2377 = vmatpush1.bf16.msra.mxu0 0
    %2378 = vmatprep.subr.bf16.mxu0 0
    %2379 = vmatpush1.bf16.msra.mxu0 0
    %2380 = vmatprep.subr.bf16.mxu0 0
    %2381 = vmatpush1.bf16.msra.mxu0 0
    %2382 = vmatprep.mubr.bf16.mxu0 0
    %2383 = vmatmul.mubr.bf16.gmra.mrb[0].mxu0 %v2104
    %v2384 = vpop.f32.mrb[0].mxu0
    %v2385 = vadd.f32 %v2336, %v2384
    %v2386 = vpop.f32.mrb[0].mxu0
    %v2387 = vpop.f32.mrb[0].mxu0
    %v2388 = vadd.f32 %v2339, %v2387
    %v2389 = vpop.f32.mrb[0].mxu0
    %2390 = vmatprep.mubr.bf16.mxu0 0
    %2391 = vmatmul.mubr.bf16.gmra.mrb[0].mxu0 %v2107
    %v2392 = vpop.f32.mrb[0].mxu0
    %v2393 = vadd.f32 %v2344, %v2392
    %v2394 = vpop.f32.mrb[0].mxu0
    %v2395 = vpop.f32.mrb[0].mxu0
    %v2396 = vadd.f32 %v2347, %v2395
    %v2397 = vpop.f32.mrb[0].mxu0
    %2398 = vdwg.mxu0
    %v2399 = vld [vmem:[%s2 + $0x6] sm:$0x1]
    %v2400 = vld [vmem:[%s3 + $0x6] sm:$0x1]
    %v2401 = vlaneseq
    %v2402 = vshrl.u32 %v2401, 7
    %v2403 = vsub.s32 0, %v2402
    %v2404 = vrot.slane %v2399, %v2403
    %v2405 = vmul.f32 %v2385, %v2404
    %v2406 = vmul.f32 %v2388, %v2404
    %v2407 = vmul.f32 %v2393, %v2404
    %v2408 = vmul.f32 %v2396, %v2404
    %v2409 = vlaneseq
    %v2410 = vshrl.u32 %v2409, 7
    %v2411 = vsub.s32 0, %v2410
    %v2412 = vrot.slane %v2400, %v2411
    %v2413 = vadd.f32 %v2405, %v2412
    %v2414 = vadd.f32 %v2406, %v2412
    %v2415 = vadd.f32 %v2407, %v2412
    %v2416 = vadd.f32 %v2408, %v2412
    %v2417 = vmax.f32 %v2413, 0.0
    %v2418 = vmax.f32 %v2414, 0.0
    %v2419 = vmax.f32 %v2415, 0.0
    %v2420 = vmax.f32 %v2416, 0.0
    %v2421 = vadd.f32 %v1761, %v2417
    %v2422 = vadd.f32 %v1762, %v2418
    %v2423 = vadd.f32 %v1763, %v2419
    %v2424 = vadd.f32 %v1764, %v2420
    %v2425 = vadd.f32 %v441, %v2421
    %v2426 = vadd.f32 %v442, %v2422
    %v2427 = vadd.f32 %v443, %v2423
    %v2428 = vadd.f32 %v444, %v2424
    %v2429 = vmul.f32 %v2425, 0.33333334
    %v2430 = vmul.f32 %v2426, 0.33333334
    %v2431 = vmul.f32 %v2427, 0.33333334
    %v2432 = vmul.f32 %v2428, 0.33333334
    %2433 = vst [vmem:[%s4] sm:$0xff] %v2429
    %2434 = vst [vmem:[%s4 + $0x8] sm:$0xff] %v2430
    %2435 = vst [vmem:[%s4 + $0x10] sm:$0xff] %v2431
    %2436 = vst [vmem:[%s4 + $0x18] sm:$0xff] %v2432
    // Predicated region
    $region22: #{fwd.1} parent=1 // pred_check
      _
    $region23: #{fwd.1} parent=1 // pred_check_branch
      %2438 = sbr.rel (0) target = $region25
    $region24: #{fwd.1} parent=1 // pred_region
      _
    $region25: #{fwd.1} parent=1 // pred_fallthru
      _
    // Predicated region
    $region26: #{fwd.1} parent=1 // pred_check
      _
    $region27: #{fwd.1} parent=1 // pred_check_branch
      %2440 = sbr.rel (0) target = $region29
    $region28: #{fwd.1} parent=1 // pred_region
      _
    $region29: #{fwd.1} parent=1 // pred_fallthru
      _
    %2441 = vsyncpa [#allocation3], 1

</llo_original>
